<compile_context>
chip_gen: v7x
topology: tpu7x:2x2x1
jax: 0.10.0
libtpu: 0.0.40
codegen_flags: <defaults>
</compile_context>

<pallas_src>
import functools

import jax
import jax.numpy as jnp
from jax.experimental import pallas as pl
from jax.experimental.pallas import tpu as pltpu

VALUE_LANES = 128  # lane-dense slab width for the critic output (sliced to 1 in the wrapper)


def _round_up(n, m):
    return ((n + m - 1) // m) * m


def _fused_heads_kernel(
    x_ref,        # [tm, H]           bf16
    w1p_ref,      # [H, FF]           bf16   policy backbone
    b1p_ref,      # [1, FF]           f32
    w2p_ref,      # [FF, tv]          bf16   policy LM head (vocab tile)
    b2p_ref,      # [1, tv]           f32
    w1c_ref,      # [H, FF]           bf16   critic backbone
    b1c_ref,      # [1, FF]           f32
    w2c_ref,      # [1, FF]           bf16   critic scalar head (row vector)
    b2c_ref,      # [1, 1]            f32
    logits_ref,   # [tm, tv]          bf16   out
    values_ref,   # [tm, VALUE_LANES] f32    out (lane-dense broadcast slab)
    hp_ref,       # [tm, FF]          bf16   scratch: policy backbone cached across V tiles
):
    j = pl.program_id(1)  # vocab-tile index (inner grid axis)

    @pl.when(j == 0)
    def _():
        x = x_ref[...]  # bf16 rows
        # policy backbone: MXU bf16 matmul, f32 accumulate, f32 GELU, cache as bf16 for reuse
        hp = jnp.dot(x, w1p_ref[...], preferred_element_type=jnp.float32) + b1p_ref[...]
        hp = jax.nn.gelu(hp)  # tanh approx; torch.nn.GELU default is exact erf (tiny mismatch)
        hp_ref[...] = hp.astype(hp_ref.dtype)

        # critic backbone + scalar head: VPU multiply + cross-lane reduction (no width-1 matmul)
        hc = jnp.dot(x, w1c_ref[...], preferred_element_type=jnp.float32) + b1c_ref[...]
        hc = jax.nn.gelu(hc)
        v = jnp.sum(hc * w2c_ref[...].astype(jnp.float32), axis=-1, keepdims=True)
        v = v + b2c_ref[...]                                   # [tm, 1]
        # lane-dense store: broadcast the per-token scalar across 128 lanes (unmasked vst)
        values_ref[...] = jnp.broadcast_to(v, values_ref.shape).astype(values_ref.dtype)

    # policy LM head for this vocab tile (runs every (i, j))
    logits = jnp.dot(hp_ref[...], w2p_ref[...], preferred_element_type=jnp.float32)
    logits_ref[...] = (logits + b2p_ref[...]).astype(logits_ref.dtype)


def fused_policy_and_value(x2d, params, *, tm=256, tv=512):
    """Run both heads over a [M, H] token slab. Returns (logits [M, V] bf16, values [M, 1] f32)."""
    M, H = x2d.shape
    FF = params["w1_p"].shape[1]
    V = params["w2_p"].shape[1]

    # Lane-/MXU-aligned tiles; zero-pad ragged M and V, slice results afterwards.
    tv = min(tv, _round_up(V, 128))
    M_pad = _round_up(M, tm)
    V_pad = _round_up(V, tv)

    x_p = jnp.pad(x2d, ((0, M_pad - M), (0, 0))).astype(jnp.bfloat16)
    w2p = jnp.pad(params["w2_p"], ((0, 0), (0, V_pad - V)))
    b2p = jnp.pad(params["b2_p"], ((0, 0), (0, V_pad - V)))

    grid = (M_pad // tm, V_pad // tv)

    logits, values = pl.pallas_call(
        _fused_heads_kernel,
        grid=grid,
        in_specs=[
            pl.BlockSpec((tm, H), lambda i, j: (i, 0)),      # x rows (re-used across V tiles)
            pl.BlockSpec((H, FF), lambda i, j: (0, 0)),      # W1_p (resident)
            pl.BlockSpec((1, FF), lambda i, j: (0, 0)),      # b1_p
            pl.BlockSpec((FF, tv), lambda i, j: (0, j)),     # W2_p vocab tile (streams)
            pl.BlockSpec((1, tv), lambda i, j: (0, j)),      # b2_p vocab tile
            pl.BlockSpec((H, FF), lambda i, j: (0, 0)),      # W1_c (resident)
            pl.BlockSpec((1, FF), lambda i, j: (0, 0)),      # b1_c
            pl.BlockSpec((1, FF), lambda i, j: (0, 0)),      # w2_c row vector
            pl.BlockSpec((1, 1), lambda i, j: (0, 0)),       # b2_c scalar
        ],
        out_specs=(
            pl.BlockSpec((tm, tv), lambda i, j: (i, j)),             # logits tile
            pl.BlockSpec((tm, VALUE_LANES), lambda i, j: (i, 0)),    # values slab (const over j)
        ),
        out_shape=(
            jax.ShapeDtypeStruct((M_pad, V_pad), jnp.bfloat16),
            jax.ShapeDtypeStruct((M_pad, VALUE_LANES), jnp.float32),
        ),
        scratch_shapes=[pltpu.VMEM((tm, FF), jnp.bfloat16)],
        compiler_params=pltpu.CompilerParams(
            dimension_semantics=("parallel", "arbitrary"),
            vmem_limit_bytes=48 * 1024 * 1024,  # < 64 MiB so the same sizing survives v7x
        ),
    )(
        x_p,
        params["w1_p"], params["b1_p"], w2p, b2p,
        params["w1_c"], params["b1_c"], params["w2_c"], params["b2_c"],
    )
    return logits[:M, :V], values[:M, :1]


def _forward(params, x, *, tm, tv):
    B, T, H = x.shape
    x2d = x.reshape(B * T, H)
    logits, values = fused_policy_and_value(x2d, params, tm=tm, tv=tv)
    V = params["w2_p"].shape[1]
    return logits.reshape(B, T, V), values.reshape(B, T, 1)


def init_params(hidden, ff, vocab, key):
    ks = jax.random.split(key, 8)
    s_h = 1.0 / jnp.sqrt(hidden)
    s_f = 1.0 / jnp.sqrt(ff)
    return dict(
        # policy (LM) parameters — bf16 weights for the MXU, f32 biases
        w1_p=(jax.random.normal(ks[0], (hidden, ff), jnp.float32) * s_h).astype(jnp.bfloat16),
        b1_p=jax.random.normal(ks[1], (1, ff), jnp.float32) * 0.02,
        w2_p=(jax.random.normal(ks[2], (ff, vocab), jnp.float32) * s_f).astype(jnp.bfloat16),
        b2_p=jax.random.normal(ks[3], (1, vocab), jnp.float32) * 0.02,
        # critic (ScalarModel) parameters — scalar head stored as a (1, FF) row vector
        w1_c=(jax.random.normal(ks[4], (hidden, ff), jnp.float32) * s_h).astype(jnp.bfloat16),
        b1_c=jax.random.normal(ks[5], (1, ff), jnp.float32) * 0.02,
        w2_c=(jax.random.normal(ks[6], (1, ff), jnp.float32) * s_f).astype(jnp.bfloat16),
        b2_c=jax.random.normal(ks[7], (1, 1), jnp.float32) * 0.02,
    )


class PolicyAndValueWrapper:
    """JAX/Pallas equivalent of the PyTorch PolicyAndValueWrapper: (policy(x), critic(x))."""

    def __init__(self, hidden, ff, vocab, key, *, tm=256, tv=512):
        self.params = init_params(hidden, ff, vocab, key)
        self._fwd = jax.jit(functools.partial(_forward, tm=tm, tv=tv))

    def __call__(self, x):
        return self._fwd(self.params, x)


if __name__ == "__main__":
    B, T, H, FF, V = 2, 8, 32, 64, 128

    key = jax.random.PRNGKey(0)
    k_x, k_params = jax.random.split(key)
    x = jax.random.normal(k_x, (B, T, H), jnp.float32)

    model = PolicyAndValueWrapper(hidden=H, ff=FF, vocab=V, key=k_params)
    policy_logits, critic_values = model(x)
    jax.block_until_ready((policy_logits, critic_values))

    # Plain-JAX reference that mirrors the kernel's bf16 rounding points.
    p = model.params
    f32 = lambda a: a.astype(jnp.float32)
    xb = f32(x.reshape(B * T, H).astype(jnp.bfloat16))

    hp = jax.nn.gelu(xb @ f32(p["w1_p"]) + p["b1_p"])
    hp = f32(hp.astype(jnp.bfloat16))
    ref_logits = (hp @ f32(p["w2_p"]) + p["b2_p"]).reshape(B, T, V)

    hc = jax.nn.gelu(xb @ f32(p["w1_c"]) + p["b1_c"])
    ref_values = (jnp.sum(hc * f32(p["w2_c"]), axis=-1, keepdims=True)
                  + p["b2_c"][0, 0]).reshape(B, T, 1)

    assert policy_logits.shape == (B, T, V)
    assert critic_values.shape == (B, T, 1)
    assert policy_logits.dtype == jnp.bfloat16
    assert jnp.allclose(f32(policy_logits), ref_logits, atol=3e-2, rtol=3e-2)
    assert jnp.allclose(critic_values, ref_values, atol=2e-3, rtol=2e-3)

    print("KERNEL_OK")
</pallas_src>

<mosaic_0001>
module attributes {stable_mosaic.version = 11 : i64} {
  func.func @_fused_heads_kernel(%arg0: i32, %arg1: i32, %arg2: memref<256x32xbf16, #tpu.memory_space<vmem>>, %arg3: memref<32x64xbf16, #tpu.memory_space<vmem>>, %arg4: memref<1x64xf32, #tpu.memory_space<vmem>>, %arg5: memref<64x128xbf16, #tpu.memory_space<vmem>>, %arg6: memref<1x128xf32, #tpu.memory_space<vmem>>, %arg7: memref<32x64xbf16, #tpu.memory_space<vmem>>, %arg8: memref<1x64xf32, #tpu.memory_space<vmem>>, %arg9: memref<1x64xbf16, #tpu.memory_space<vmem>>, %arg10: memref<1x1xf32, #tpu.memory_space<vmem>>, %arg11: memref<256x128xbf16, #tpu.memory_space<vmem>>, %arg12: memref<256x128xf32, #tpu.memory_space<vmem>>, %arg13: memref<256x64xbf16, #tpu.memory_space<vmem>>) attributes {dimension_semantics = [#tpu.dimension_semantics<parallel>, #tpu.dimension_semantics<arbitrary>], iteration_bounds = array<i64: 1, 1>, scalar_prefetch = 0 : i64, scratch_operands = 1 : i64, tpu.core_type = #tpu.core_type<tc>, window_params = [{transform_indices = @transform_0, window_bounds = array<i64: 256, 32>}, {pipeline_mode = #tpu.pipeline_mode<synchronous>, transform_indices = @transform_1, window_bounds = array<i64: 32, 64>}, {pipeline_mode = #tpu.pipeline_mode<synchronous>, transform_indices = @transform_2, window_bounds = array<i64: 1, 64>}, {transform_indices = @transform_3, window_bounds = array<i64: 64, 128>}, {transform_indices = @transform_4, window_bounds = array<i64: 1, 128>}, {pipeline_mode = #tpu.pipeline_mode<synchronous>, transform_indices = @transform_5, window_bounds = array<i64: 32, 64>}, {pipeline_mode = #tpu.pipeline_mode<synchronous>, transform_indices = @transform_6, window_bounds = array<i64: 1, 64>}, {pipeline_mode = #tpu.pipeline_mode<synchronous>, transform_indices = @transform_7, window_bounds = array<i64: 1, 64>}, {pipeline_mode = #tpu.pipeline_mode<synchronous>, transform_indices = @transform_8, window_bounds = array<i64: 1, 1>}, {transform_indices = @transform_9, window_bounds = array<i64: 256, 128>}, {transform_indices = @transform_10, window_bounds = array<i64: 256, 128>}]} {
    %c0_i32 = arith.constant 0 : i32
    %0 = arith.cmpi eq, %arg1, %c0_i32 : i32
    %1 = arith.extui %0 : i1 to i32
    %c0_i32_0 = arith.constant 0 : i32
    %2 = arith.cmpi ne, %1, %c0_i32_0 : i32
    scf.if %2 {
      %c0_8 = arith.constant 0 : index
      %c0_9 = arith.constant 0 : index
      %11 = vector.load %arg2[%c0_8, %c0_9] : memref<256x32xbf16, #tpu.memory_space<vmem>>, vector<256x32xbf16>
      %c0_10 = arith.constant 0 : index
      %c0_11 = arith.constant 0 : index
      %12 = vector.load %arg3[%c0_10, %c0_11] : memref<32x64xbf16, #tpu.memory_space<vmem>>, vector<32x64xbf16>
      %cst_12 = arith.constant dense<0.000000e+00> : vector<256x64xf32>
      %13 = tpu.matmul %11, %12, %cst_12 {dimension_numbers = #tpu.dot_dimension_numbers<[1], [0], [0], [1], [0, 0, 1, 1], [], []>} : vector<256x32xbf16>, vector<32x64xbf16>, vector<256x64xf32> -> vector<256x64xf32>
      %c0_13 = arith.constant 0 : index
      %c0_14 = arith.constant 0 : index
      %14 = vector.load %arg4[%c0_13, %c0_14] : memref<1x64xf32, #tpu.memory_space<vmem>>, vector<1x64xf32>
      %15 = vector.broadcast %14 : vector<1x64xf32> to vector<256x64xf32>
      %16 = arith.addf %13, %15 : vector<256x64xf32>
      %17 = arith.mulf %16, %16 : vector<256x64xf32>
      %18 = arith.mulf %16, %17 : vector<256x64xf32>
      %cst_15 = arith.constant 4.471500e-02 : f32
      %19 = vector.broadcast %cst_15 : f32 to vector<256x64xf32>
      %20 = arith.mulf %19, %18 : vector<256x64xf32>
      %21 = arith.addf %16, %20 : vector<256x64xf32>
      %cst_16 = arith.constant 0.797884583 : f32
      %22 = vector.broadcast %cst_16 : f32 to vector<256x64xf32>
      %23 = arith.mulf %22, %21 : vector<256x64xf32>
      %24 = math.tanh %23 : vector<256x64xf32>
      %cst_17 = arith.constant 1.000000e+00 : f32
      %25 = vector.broadcast %cst_17 : f32 to vector<256x64xf32>
      %26 = arith.addf %25, %24 : vector<256x64xf32>
      %cst_18 = arith.constant 5.000000e-01 : f32
      %27 = vector.broadcast %cst_18 : f32 to vector<256x64xf32>
      %28 = arith.mulf %27, %26 : vector<256x64xf32>
      %29 = arith.mulf %16, %28 : vector<256x64xf32>
      %30 = arith.truncf %29 : vector<256x64xf32> to vector<256x64xbf16>
      %c0_19 = arith.constant 0 : index
      %c0_20 = arith.constant 0 : index
      %31 = vector.load %arg13[%c0_19, %c0_20] : memref<256x64xbf16, #tpu.memory_space<vmem>>, vector<256x64xbf16>
      tpu.vector_store %arg13[%c0_19, %c0_20], %30 {strides = array<i32>} : memref<256x64xbf16, #tpu.memory_space<vmem>>, vector<256x64xbf16>,
      %c0_21 = arith.constant 0 : index
      %c0_22 = arith.constant 0 : index
      %32 = vector.load %arg7[%c0_21, %c0_22] : memref<32x64xbf16, #tpu.memory_space<vmem>>, vector<32x64xbf16>
      %cst_23 = arith.constant dense<0.000000e+00> : vector<256x64xf32>
      %33 = tpu.matmul %11, %32, %cst_23 {dimension_numbers = #tpu.dot_dimension_numbers<[1], [0], [0], [1], [0, 0, 1, 1], [], []>} : vector<256x32xbf16>, vector<32x64xbf16>, vector<256x64xf32> -> vector<256x64xf32>
      %c0_24 = arith.constant 0 : index
      %c0_25 = arith.constant 0 : index
      %34 = vector.load %arg8[%c0_24, %c0_25] : memref<1x64xf32, #tpu.memory_space<vmem>>, vector<1x64xf32>
      %35 = vector.broadcast %34 : vector<1x64xf32> to vector<256x64xf32>
      %36 = arith.addf %33, %35 : vector<256x64xf32>
      %37 = arith.mulf %36, %36 : vector<256x64xf32>
      %38 = arith.mulf %36, %37 : vector<256x64xf32>
      %cst_26 = arith.constant 4.471500e-02 : f32
      %39 = vector.broadcast %cst_26 : f32 to vector<256x64xf32>
      %40 = arith.mulf %39, %38 : vector<256x64xf32>
      %41 = arith.addf %36, %40 : vector<256x64xf32>
      %cst_27 = arith.constant 0.797884583 : f32
      %42 = vector.broadcast %cst_27 : f32 to vector<256x64xf32>
      %43 = arith.mulf %42, %41 : vector<256x64xf32>
      %44 = math.tanh %43 : vector<256x64xf32>
      %cst_28 = arith.constant 1.000000e+00 : f32
      %45 = vector.broadcast %cst_28 : f32 to vector<256x64xf32>
      %46 = arith.addf %45, %44 : vector<256x64xf32>
      %cst_29 = arith.constant 5.000000e-01 : f32
      %47 = vector.broadcast %cst_29 : f32 to vector<256x64xf32>
      %48 = arith.mulf %47, %46 : vector<256x64xf32>
      %49 = arith.mulf %36, %48 : vector<256x64xf32>
      %c0_30 = arith.constant 0 : index
      %c0_31 = arith.constant 0 : index
      %50 = vector.load %arg9[%c0_30, %c0_31] : memref<1x64xbf16, #tpu.memory_space<vmem>>, vector<1x64xbf16>
      %51 = arith.extf %50 : vector<1x64xbf16> to vector<1x64xf32>
      %52 = vector.broadcast %51 : vector<1x64xf32> to vector<256x64xf32>
      %53 = arith.mulf %49, %52 : vector<256x64xf32>
      %cst_32 = arith.constant dense<0.000000e+00> : vector<256xf32>
      %54 = vector.multi_reduction <add>, %53, %cst_32 [1] : vector<256x64xf32> to vector<256xf32>
      %55 = vector.shape_cast %54 : vector<256xf32> to vector<256x1xf32>
      %c0_33 = arith.constant 0 : index
      %c0_34 = arith.constant 0 : index
      %56 = vector.load %arg10[%c0_33, %c0_34] : memref<1x1xf32, #tpu.memory_space<vmem>>, vector<1x1xf32>
      %57 = vector.broadcast %56 : vector<1x1xf32> to vector<256x1xf32>
      %58 = arith.addf %55, %57 : vector<256x1xf32>
      %59 = vector.shape_cast %58 : vector<256x1xf32> to vector<256x1xf32>
      %60 = vector.broadcast %59 : vector<256x1xf32> to vector<256x128xf32>
      %c0_35 = arith.constant 0 : index
      %c0_36 = arith.constant 0 : index
      %61 = vector.load %arg12[%c0_35, %c0_36] : memref<256x128xf32, #tpu.memory_space<vmem>>, vector<256x128xf32>
      tpu.vector_store %arg12[%c0_35, %c0_36], %60 {strides = array<i32>} : memref<256x128xf32, #tpu.memory_space<vmem>>, vector<256x128xf32>,
    } else {
    }
    %c0 = arith.constant 0 : index
    %c0_1 = arith.constant 0 : index
    %3 = vector.load %arg13[%c0, %c0_1] : memref<256x64xbf16, #tpu.memory_space<vmem>>, vector<256x64xbf16>
    %c0_2 = arith.constant 0 : index
    %c0_3 = arith.constant 0 : index
    %4 = vector.load %arg5[%c0_2, %c0_3] : memref<64x128xbf16, #tpu.memory_space<vmem>>, vector<64x128xbf16>
    %cst = arith.constant dense<0.000000e+00> : vector<256x128xf32>
    %5 = tpu.matmul %3, %4, %cst {dimension_numbers = #tpu.dot_dimension_numbers<[1], [0], [0], [1], [0, 0, 1, 1], [], []>} : vector<256x64xbf16>, vector<64x128xbf16>, vector<256x128xf32> -> vector<256x128xf32>
    %c0_4 = arith.constant 0 : index
    %c0_5 = arith.constant 0 : index
    %6 = vector.load %arg6[%c0_4, %c0_5] : memref<1x128xf32, #tpu.memory_space<vmem>>, vector<1x128xf32>
    %7 = vector.broadcast %6 : vector<1x128xf32> to vector<256x128xf32>
    %8 = arith.addf %5, %7 : vector<256x128xf32>
    %9 = arith.truncf %8 : vector<256x128xf32> to vector<256x128xbf16>
    %c0_6 = arith.constant 0 : index
    %c0_7 = arith.constant 0 : index
    %10 = vector.load %arg11[%c0_6, %c0_7] : memref<256x128xbf16, #tpu.memory_space<vmem>>, vector<256x128xbf16>
    tpu.vector_store %arg11[%c0_6, %c0_7], %9 {strides = array<i32>} : memref<256x128xbf16, #tpu.memory_space<vmem>>, vector<256x128xbf16>,
    return
  }
  func.func @transform_0(%arg0: i32, %arg1: i32) -> (i32, i32) {
    %c0_i32 = arith.constant 0 : i32
    %c0_i32_0 = arith.constant 0 : i32
    return %arg0, %c0_i32 : i32, i32
  }
  func.func @transform_1(%arg0: i32, %arg1: i32) -> (i32, i32) {
    %c0_i32 = arith.constant 0 : i32
    %c0_i32_0 = arith.constant 0 : i32
    %c0_i32_1 = arith.constant 0 : i32
    return %c0_i32, %c0_i32_0 : i32, i32
  }
  func.func @transform_2(%arg0: i32, %arg1: i32) -> (i32, i32) {
    %c0_i32 = arith.constant 0 : i32
    %c0_i32_0 = arith.constant 0 : i32
    %c0_i32_1 = arith.constant 0 : i32
    return %c0_i32, %c0_i32_0 : i32, i32
  }
  func.func @transform_3(%arg0: i32, %arg1: i32) -> (i32, i32) {
    %c0_i32 = arith.constant 0 : i32
    %c0_i32_0 = arith.constant 0 : i32
    return %c0_i32, %arg1 : i32, i32
  }
  func.func @transform_4(%arg0: i32, %arg1: i32) -> (i32, i32) {
    %c0_i32 = arith.constant 0 : i32
    %c0_i32_0 = arith.constant 0 : i32
    return %c0_i32, %arg1 : i32, i32
  }
  func.func @transform_5(%arg0: i32, %arg1: i32) -> (i32, i32) {
    %c0_i32 = arith.constant 0 : i32
    %c0_i32_0 = arith.constant 0 : i32
    %c0_i32_1 = arith.constant 0 : i32
    return %c0_i32, %c0_i32_0 : i32, i32
  }
  func.func @transform_6(%arg0: i32, %arg1: i32) -> (i32, i32) {
    %c0_i32 = arith.constant 0 : i32
    %c0_i32_0 = arith.constant 0 : i32
    %c0_i32_1 = arith.constant 0 : i32
    return %c0_i32, %c0_i32_0 : i32, i32
  }
  func.func @transform_7(%arg0: i32, %arg1: i32) -> (i32, i32) {
    %c0_i32 = arith.constant 0 : i32
    %c0_i32_0 = arith.constant 0 : i32
    %c0_i32_1 = arith.constant 0 : i32
    return %c0_i32, %c0_i32_0 : i32, i32
  }
  func.func @transform_8(%arg0: i32, %arg1: i32) -> (i32, i32) {
    %c0_i32 = arith.constant 0 : i32
    %c0_i32_0 = arith.constant 0 : i32
    %c0_i32_1 = arith.constant 0 : i32
    return %c0_i32, %c0_i32_0 : i32, i32
  }
  func.func @transform_9(%arg0: i32, %arg1: i32) -> (i32, i32) {
    %c0_i32 = arith.constant 0 : i32
    return %arg0, %arg1 : i32, i32
  }
  func.func @transform_10(%arg0: i32, %arg1: i32) -> (i32, i32) {
    %c0_i32 = arith.constant 0 : i32
    %c0_i32_0 = arith.constant 0 : i32
    return %arg0, %c0_i32 : i32, i32
  }
}

</mosaic_0001>

<llo_original>
// kernel: _forward.1
$region0: #{_forward.1}
  #allocation0 [shape = 'u32[]', space=smem, size = 0x4, offset = 0x4, fixed_abs, tag = 'smem constant byte address 0x4 - core index']
  #allocation1 [shape = 'u32[144,128]{1,0:T(1,128)}', space=vmem, size = 0x12000, scoped, tag = 'internal scratch']
  #allocation2 [shape = 'bf16[256,64]{1,0:T(16,128)(2,1)}', space=vmem, size = 0x10000, scoped, tag = 'scratch operand']
  #allocation3 [shape = 'f32[1,1]{1,0:T(1,128)S(1)}', space=vmem, size = 0x200, scoped, tag = 'scoped memory for _forward.1']
  %s0 = inlined_call_operand.vmem [shape: bf16[256,32], index: 0, kind: input, shape index: {}]
  %s1 = inlined_call_operand.vmem [shape: bf16[32,64], index: 1, kind: input, shape index: {}]
  %s2 = inlined_call_operand.vmem [shape: f32[1,64], index: 2, kind: input, shape index: {}]
  %s3 = inlined_call_operand.vmem [shape: bf16[64,128], index: 3, kind: input, shape index: {}]
  %s4 = inlined_call_operand.vmem [shape: f32[1,128], index: 4, kind: input, shape index: {}]
  %s5 = inlined_call_operand.vmem [shape: bf16[32,64], index: 5, kind: input, shape index: {}]
  %s6 = inlined_call_operand.vmem [shape: f32[1,64], index: 6, kind: input, shape index: {}]
  %s7 = inlined_call_operand.vmem [shape: bf16[1,64], index: 7, kind: input, shape index: {}]
  %s8 = inlined_call_operand.<no memory space> [shape: f32[1,1], index: 8, kind: input, shape index: {}]
  %s9 = inlined_call_operand.vmem [shape: bf16[256,128], index: 9, kind: output, shape index: {0}]
  %s10 = inlined_call_operand.vmem [shape: f32[256,128], index: 10, kind: output, shape index: {1}]
  %11 = xla_tuple %s9, %s10
  %s12 = sld [smem:[#allocation0]]
  $region58: #{_forward.1} parent=0
    _
  %s14 = ssub.s32 1, %s12
  %s15 = scalar_select 0, %s14, %s12
  %v16 = vstv %s8
  %17 = vst [vmem:[#allocation3] sm:$0x1] %v16
  // Predicated region
  $region2: #{_forward.1} parent=0 // pred_check
    _
  $region3: #{_forward.1} parent=0 // pred_check_branch
    %19 = sbr.rel (0) target = $region5
  $region4: #{_forward.1} parent=0 // pred_region
    _
  $region5: #{_forward.1} parent=0 // pred_fallthru
    _
  // Predicated region
  $region6: #{_forward.1} parent=0 // pred_check
    _
  $region7: #{_forward.1} parent=0 // pred_check_branch
    %21 = sbr.rel (0) target = $region9
  $region8: #{_forward.1} parent=0 // pred_region
    _
  $region9: #{_forward.1} parent=0 // pred_fallthru
    _
  // Predicated region
  $region10: #{_forward.1} parent=0 // pred_check
    _
  $region11: #{_forward.1} parent=0 // pred_check_branch
    %23 = sbr.rel (0) target = $region13
  $region12: #{_forward.1} parent=0 // pred_region
    _
  $region13: #{_forward.1} parent=0 // pred_fallthru
    _
  // Predicated region
  $region14: #{_forward.1} parent=0 // pred_check
    _
  $region15: #{_forward.1} parent=0 // pred_check_branch
    %25 = sbr.rel (0) target = $region17
  $region16: #{_forward.1} parent=0 // pred_region
    _
  $region17: #{_forward.1} parent=0 // pred_fallthru
    _
  // Predicated region
  $region18: #{_forward.1} parent=0 // pred_check
    _
  $region19: #{_forward.1} parent=0 // pred_check_branch
    %27 = sbr.rel (0) target = $region21
  $region20: #{_forward.1} parent=0 // pred_region
    _
  $region21: #{_forward.1} parent=0 // pred_fallthru
    _
  // Predicated region
  $region22: #{_forward.1} parent=0 // pred_check
    _
  $region23: #{_forward.1} parent=0 // pred_check_branch
    %29 = sbr.rel (0) target = $region25
  $region24: #{_forward.1} parent=0 // pred_region
    _
  $region25: #{_forward.1} parent=0 // pred_fallthru
    _
  // Predicated region
  $region26: #{_forward.1} parent=0 // pred_check
    _
  $region27: #{_forward.1} parent=0 // pred_check_branch
    %31 = sbr.rel (0) target = $region29
  $region28: #{_forward.1} parent=0 // pred_region
    _
  $region29: #{_forward.1} parent=0 // pred_fallthru
    _
  // Predicated region
  $region30: #{_forward.1} parent=0 // pred_check
    _
  $region31: #{_forward.1} parent=0 // pred_check_branch
    %33 = sbr.rel (0) target = $region33
  $region32: #{_forward.1} parent=0 // pred_region
    _
  $region33: #{_forward.1} parent=0 // pred_fallthru
    _
  // Predicated region
  $region34: #{_forward.1} parent=0 // pred_check
    _
  $region35: #{_forward.1} parent=0 // pred_check_branch
    %35 = sbr.rel (0) target = $region37
  $region36: #{_forward.1} parent=0 // pred_region
    _
  $region37: #{_forward.1} parent=0 // pred_fallthru
    _
  %p37 = scmp.eq.s32.totalorder 0, 0
  // Predicated region
  $region38: #{_forward.1} parent=0 // pred_check
    %p38 = pneg %p37
  $region39: #{_forward.1} parent=0 // pred_check_branch
    %40 = sbr.rel (%p38) target = $region41
  $region40: #{_forward.1} parent=0 // pred_region
    %v41 = vld [vmem:[%s0] sm:$0xf]
    %v42 = vld [vmem:[%s0 + $0x4] sm:$0xf]
    %v43 = vld [vmem:[%s0 + $0x8] sm:$0xf]
    %v44 = vld [vmem:[%s0 + $0xc] sm:$0xf]
    %v45 = vld [vmem:[%s0 + $0x10] sm:$0xf]
    %v46 = vld [vmem:[%s0 + $0x14] sm:$0xf]
    %v47 = vld [vmem:[%s0 + $0x18] sm:$0xf]
    %v48 = vld [vmem:[%s0 + $0x1c] sm:$0xf]
    %v49 = vld [vmem:[%s0 + $0x20] sm:$0xf]
    %v50 = vld [vmem:[%s0 + $0x24] sm:$0xf]
    %v51 = vld [vmem:[%s0 + $0x28] sm:$0xf]
    %v52 = vld [vmem:[%s0 + $0x2c] sm:$0xf]
    %v53 = vld [vmem:[%s0 + $0x30] sm:$0xf]
    %v54 = vld [vmem:[%s0 + $0x34] sm:$0xf]
    %v55 = vld [vmem:[%s0 + $0x38] sm:$0xf]
    %v56 = vld [vmem:[%s0 + $0x3c] sm:$0xf]
    %v57 = vld [vmem:[%s0 + $0x40] sm:$0xf]
    %v58 = vld [vmem:[%s0 + $0x44] sm:$0xf]
    %v59 = vld [vmem:[%s0 + $0x48] sm:$0xf]
    %v60 = vld [vmem:[%s0 + $0x4c] sm:$0xf]
    %v61 = vld [vmem:[%s0 + $0x50] sm:$0xf]
    %v62 = vld [vmem:[%s0 + $0x54] sm:$0xf]
    %v63 = vld [vmem:[%s0 + $0x58] sm:$0xf]
    %v64 = vld [vmem:[%s0 + $0x5c] sm:$0xf]
    %v65 = vld [vmem:[%s0 + $0x60] sm:$0xf]
    %v66 = vld [vmem:[%s0 + $0x64] sm:$0xf]
    %v67 = vld [vmem:[%s0 + $0x68] sm:$0xf]
    %v68 = vld [vmem:[%s0 + $0x6c] sm:$0xf]
    %v69 = vld [vmem:[%s0 + $0x70] sm:$0xf]
    %v70 = vld [vmem:[%s0 + $0x74] sm:$0xf]
    %v71 = vld [vmem:[%s0 + $0x78] sm:$0xf]
    %v72 = vld [vmem:[%s0 + $0x7c] sm:$0xf]
    %v73 = vld [vmem:[%s1] sm:$0xf]
    %v74 = vld [vmem:[%s1 + $0x4] sm:$0xf]
    %v75 = vld [vmem:[%s1 + $0x8] sm:$0xf]
    %v76 = vld [vmem:[%s1 + $0xc] sm:$0xf]
    %v77 = vld [vmem:[%s2] sm:$0x1]
    %v79 = vlaneseq
    %v80 = vshrl.u32 %v79, 7
    %v81 = vsub.s32 0, %v80
    %v82 = vrot.slane %v77, %v81
    %v116 = vunpack.c.l.b16 %v41
    %v117 = vunpack.c.l.b16 %v42
    %v118 = vunpack.c.l.b16 %v43
    %v119 = vunpack.c.l.b16 %v44
    %v120 = vunpack.c.l.b16 %v45
    %v121 = vunpack.c.l.b16 %v46
    %v122 = vunpack.c.l.b16 %v47
    %v123 = vunpack.c.l.b16 %v48
    %v124 = vunpack.c.l.b16 %v49
    %v125 = vunpack.c.l.b16 %v50
    %v126 = vunpack.c.l.b16 %v51
    %v127 = vunpack.c.l.b16 %v52
    %v128 = vunpack.c.l.b16 %v53
    %v129 = vunpack.c.l.b16 %v54
    %v130 = vunpack.c.l.b16 %v55
    %v131 = vunpack.c.l.b16 %v56
    %v132 = vunpack.c.l.b16 %v57
    %v133 = vunpack.c.l.b16 %v58
    %v134 = vunpack.c.l.b16 %v59
    %v135 = vunpack.c.l.b16 %v60
    %v136 = vunpack.c.l.b16 %v61
    %v137 = vunpack.c.l.b16 %v62
    %v138 = vunpack.c.l.b16 %v63
    %v139 = vunpack.c.l.b16 %v64
    %v140 = vunpack.c.l.b16 %v65
    %v141 = vunpack.c.l.b16 %v66
    %v142 = vunpack.c.l.b16 %v67
    %v143 = vunpack.c.l.b16 %v68
    %v144 = vunpack.c.l.b16 %v69
    %v145 = vunpack.c.l.b16 %v70
    %v146 = vunpack.c.l.b16 %v71
    %v147 = vunpack.c.l.b16 %v72
    %v148 = vpack.c.b16 %v117, %v116
    %v149 = vpack.c.b16 %v119, %v118
    %v150 = vpack.c.b16 %v121, %v120
    %v151 = vpack.c.b16 %v123, %v122
    %v152 = vpack.c.b16 %v125, %v124
    %v153 = vpack.c.b16 %v127, %v126
    %v154 = vpack.c.b16 %v129, %v128
    %v155 = vpack.c.b16 %v131, %v130
    %v156 = vpack.c.b16 %v133, %v132
    %v157 = vpack.c.b16 %v135, %v134
    %v158 = vpack.c.b16 %v137, %v136
    %v159 = vpack.c.b16 %v139, %v138
    %v160 = vpack.c.b16 %v141, %v140
    %v161 = vpack.c.b16 %v143, %v142
    %v162 = vpack.c.b16 %v145, %v144
    %v163 = vpack.c.b16 %v147, %v146
    %v168 = vunpack.c.l.b16 %v73
    %v169 = vunpack.c.l.b16 %v74
    %v170 = vunpack.c.l.b16 %v75
    %v171 = vunpack.c.l.b16 %v76
    %v172 = vpack.c.b16 %v169, %v168
    %v173 = vpack.c.b16 %v171, %v170
    %vm176 = vcmask 261120
    %v178 = vsel %vm176, %v148, 0
    %v181 = vsel %vm176, %v149, 0
    %v184 = vsel %vm176, %v150, 0
    %v187 = vsel %vm176, %v151, 0
    %v190 = vsel %vm176, %v152, 0
    %v193 = vsel %vm176, %v153, 0
    %v196 = vsel %vm176, %v154, 0
    %v199 = vsel %vm176, %v155, 0
    %v202 = vsel %vm176, %v156, 0
    %v205 = vsel %vm176, %v157, 0
    %v208 = vsel %vm176, %v158, 0
    %v211 = vsel %vm176, %v159, 0
    %v214 = vsel %vm176, %v160, 0
    %v217 = vsel %vm176, %v161, 0
    %v220 = vsel %vm176, %v162, 0
    %v223 = vsel %vm176, %v163, 0
    %225 = vmatprep.subr.bf16.mxu0 0
    %226 = vmatpush1.bf16.msra.mxu0 %v172
    %227 = vmatprep.subr.bf16.mxu0 0
    %228 = vmatpush1.bf16.msra.mxu0 %v173
    %229 = vmatprep.subr.bf16.mxu0 0
    %230 = vmatpush1.bf16.msra.mxu0 0
    %231 = vmatprep.subr.bf16.mxu0 0
    %232 = vmatpush1.bf16.msra.mxu0 0
    %233 = vmatprep.subr.bf16.mxu0 0
    %234 = vmatpush1.bf16.msra.mxu0 0
    %235 = vmatprep.subr.bf16.mxu0 0
    %236 = vmatpush1.bf16.msra.mxu0 0
    %237 = vmatprep.subr.bf16.mxu0 0
    %238 = vmatpush1.bf16.msra.mxu0 0
    %239 = vmatprep.subr.bf16.mxu0 0
    %240 = vmatpush1.bf16.msra.mxu0 0
    %241 = vmatprep.subr.bf16.mxu0 0
    %242 = vmatpush1.bf16.msra.mxu0 0
    %243 = vmatprep.subr.bf16.mxu0 0
    %244 = vmatpush1.bf16.msra.mxu0 0
    %245 = vmatprep.subr.bf16.mxu0 0
    %246 = vmatpush1.bf16.msra.mxu0 0
    %247 = vmatprep.subr.bf16.mxu0 0
    %248 = vmatpush1.bf16.msra.mxu0 0
    %249 = vmatprep.subr.bf16.mxu0 0
    %250 = vmatpush1.bf16.msra.mxu0 0
    %251 = vmatprep.subr.bf16.mxu0 0
    %252 = vmatpush1.bf16.msra.mxu0 0
    %253 = vmatprep.subr.bf16.mxu0 0
    %254 = vmatpush1.bf16.msra.mxu0 0
    %255 = vmatprep.subr.bf16.mxu0 0
    %256 = vmatpush1.bf16.msra.mxu0 0
    %257 = vmatprep.mubr.bf16.mxu0 0
    %258 = vmatmul.mubr.bf16.gmra.mrb[0].mxu0 %v178
    %v259 = vpop.f32.mrb[0].mxu0
    %v260 = vadd.f32 %v82, %v259
    %v261 = vpop.f32.mrb[0].mxu0
    %v262 = vpop.f32.mrb[0].mxu0
    %v263 = vadd.f32 %v82, %v262
    %v264 = vpop.f32.mrb[0].mxu0
    %265 = vmatprep.mubr.bf16.mxu0 0
    %266 = vmatmul.mubr.bf16.gmra.mrb[0].mxu0 %v181
    %v267 = vpop.f32.mrb[0].mxu0
    %v268 = vadd.f32 %v82, %v267
    %v269 = vpop.f32.mrb[0].mxu0
    %v270 = vpop.f32.mrb[0].mxu0
    %v271 = vadd.f32 %v82, %v270
    %v272 = vpop.f32.mrb[0].mxu0
    %273 = vmatprep.mubr.bf16.mxu0 0
    %274 = vmatmul.mubr.bf16.gmra.mrb[0].mxu0 %v184
    %v275 = vpop.f32.mrb[0].mxu0
    %v276 = vadd.f32 %v82, %v275
    %v277 = vpop.f32.mrb[0].mxu0
    %v278 = vpop.f32.mrb[0].mxu0
    %v279 = vadd.f32 %v82, %v278
    %v280 = vpop.f32.mrb[0].mxu0
    %281 = vmatprep.mubr.bf16.mxu0 0
    %282 = vmatmul.mubr.bf16.gmra.mrb[0].mxu0 %v187
    %v283 = vpop.f32.mrb[0].mxu0
    %v284 = vadd.f32 %v82, %v283
    %v285 = vpop.f32.mrb[0].mxu0
    %v286 = vpop.f32.mrb[0].mxu0
    %v287 = vadd.f32 %v82, %v286
    %v288 = vpop.f32.mrb[0].mxu0
    %289 = vmatprep.mubr.bf16.mxu0 0
    %290 = vmatmul.mubr.bf16.gmra.mrb[0].mxu0 %v190
    %v291 = vpop.f32.mrb[0].mxu0
    %v292 = vadd.f32 %v82, %v291
    %v293 = vpop.f32.mrb[0].mxu0
    %v294 = vpop.f32.mrb[0].mxu0
    %v295 = vadd.f32 %v82, %v294
    %v296 = vpop.f32.mrb[0].mxu0
    %297 = vmatprep.mubr.bf16.mxu0 0
    %298 = vmatmul.mubr.bf16.gmra.mrb[0].mxu0 %v193
    %v299 = vpop.f32.mrb[0].mxu0
    %v300 = vadd.f32 %v82, %v299
    %v301 = vpop.f32.mrb[0].mxu0
    %v302 = vpop.f32.mrb[0].mxu0
    %v303 = vadd.f32 %v82, %v302
    %v304 = vpop.f32.mrb[0].mxu0
    %305 = vmatprep.mubr.bf16.mxu0 0
    %306 = vmatmul.mubr.bf16.gmra.mrb[0].mxu0 %v196
    %v307 = vpop.f32.mrb[0].mxu0
    %v308 = vadd.f32 %v82, %v307
    %v309 = vpop.f32.mrb[0].mxu0
    %v310 = vpop.f32.mrb[0].mxu0
    %v311 = vadd.f32 %v82, %v310
    %v312 = vpop.f32.mrb[0].mxu0
    %313 = vmatprep.mubr.bf16.mxu0 0
    %314 = vmatmul.mubr.bf16.gmra.mrb[0].mxu0 %v199
    %v315 = vpop.f32.mrb[0].mxu0
    %v316 = vadd.f32 %v82, %v315
    %v317 = vpop.f32.mrb[0].mxu0
    %v318 = vpop.f32.mrb[0].mxu0
    %v319 = vadd.f32 %v82, %v318
    %v320 = vpop.f32.mrb[0].mxu0
    %321 = vmatprep.mubr.bf16.mxu0 0
    %322 = vmatmul.mubr.bf16.gmra.mrb[0].mxu0 %v202
    %v323 = vpop.f32.mrb[0].mxu0
    %v324 = vadd.f32 %v82, %v323
    %v325 = vpop.f32.mrb[0].mxu0
    %v326 = vpop.f32.mrb[0].mxu0
    %v327 = vadd.f32 %v82, %v326
    %v328 = vpop.f32.mrb[0].mxu0
    %329 = vmatprep.mubr.bf16.mxu0 0
    %330 = vmatmul.mubr.bf16.gmra.mrb[0].mxu0 %v205
    %v331 = vpop.f32.mrb[0].mxu0
    %v332 = vadd.f32 %v82, %v331
    %v333 = vpop.f32.mrb[0].mxu0
    %v334 = vpop.f32.mrb[0].mxu0
    %v335 = vadd.f32 %v82, %v334
    %v336 = vpop.f32.mrb[0].mxu0
    %337 = vmatprep.mubr.bf16.mxu0 0
    %338 = vmatmul.mubr.bf16.gmra.mrb[0].mxu0 %v208
    %v339 = vpop.f32.mrb[0].mxu0
    %v340 = vadd.f32 %v82, %v339
    %v341 = vpop.f32.mrb[0].mxu0
    %v342 = vpop.f32.mrb[0].mxu0
    %v343 = vadd.f32 %v82, %v342
    %v344 = vpop.f32.mrb[0].mxu0
    %345 = vmatprep.mubr.bf16.mxu0 0
    %346 = vmatmul.mubr.bf16.gmra.mrb[0].mxu0 %v211
    %v347 = vpop.f32.mrb[0].mxu0
    %v348 = vadd.f32 %v82, %v347
    %v349 = vpop.f32.mrb[0].mxu0
    %v350 = vpop.f32.mrb[0].mxu0
    %v351 = vadd.f32 %v82, %v350
    %v352 = vpop.f32.mrb[0].mxu0
    %353 = vmatprep.mubr.bf16.mxu0 0
    %354 = vmatmul.mubr.bf16.gmra.mrb[0].mxu0 %v214
    %v355 = vpop.f32.mrb[0].mxu0
    %v356 = vadd.f32 %v82, %v355
    %v357 = vpop.f32.mrb[0].mxu0
    %v358 = vpop.f32.mrb[0].mxu0
    %v359 = vadd.f32 %v82, %v358
    %v360 = vpop.f32.mrb[0].mxu0
    %361 = vmatprep.mubr.bf16.mxu0 0
    %362 = vmatmul.mubr.bf16.gmra.mrb[0].mxu0 %v217
    %v363 = vpop.f32.mrb[0].mxu0
    %v364 = vadd.f32 %v82, %v363
    %v365 = vpop.f32.mrb[0].mxu0
    %v366 = vpop.f32.mrb[0].mxu0
    %v367 = vadd.f32 %v82, %v366
    %v368 = vpop.f32.mrb[0].mxu0
    %369 = vmatprep.mubr.bf16.mxu0 0
    %370 = vmatmul.mubr.bf16.gmra.mrb[0].mxu0 %v220
    %v371 = vpop.f32.mrb[0].mxu0
    %v372 = vadd.f32 %v82, %v371
    %v373 = vpop.f32.mrb[0].mxu0
    %v374 = vpop.f32.mrb[0].mxu0
    %v375 = vadd.f32 %v82, %v374
    %v376 = vpop.f32.mrb[0].mxu0
    %377 = vmatprep.mubr.bf16.mxu0 0
    %378 = vmatmul.mubr.bf16.gmra.mrb[0].mxu0 %v223
    %v379 = vpop.f32.mrb[0].mxu0
    %v380 = vadd.f32 %v82, %v379
    %v381 = vpop.f32.mrb[0].mxu0
    %v382 = vpop.f32.mrb[0].mxu0
    %v383 = vadd.f32 %v82, %v382
    %v384 = vpop.f32.mrb[0].mxu0
    %385 = vdwg.mxu0
    %v386 = vmul.f32 %v260, %v260
    %v387 = vmul.f32 %v263, %v263
    %v388 = vmul.f32 %v268, %v268
    %v389 = vmul.f32 %v271, %v271
    %v390 = vmul.f32 %v276, %v276
    %v391 = vmul.f32 %v279, %v279
    %v392 = vmul.f32 %v284, %v284
    %v393 = vmul.f32 %v287, %v287
    %v394 = vmul.f32 %v292, %v292
    %v395 = vmul.f32 %v295, %v295
    %v396 = vmul.f32 %v300, %v300
    %v397 = vmul.f32 %v303, %v303
    %v398 = vmul.f32 %v308, %v308
    %v399 = vmul.f32 %v311, %v311
    %v400 = vmul.f32 %v316, %v316
    %v401 = vmul.f32 %v319, %v319
    %v402 = vmul.f32 %v324, %v324
    %v403 = vmul.f32 %v327, %v327
    %v404 = vmul.f32 %v332, %v332
    %v405 = vmul.f32 %v335, %v335
    %v406 = vmul.f32 %v340, %v340
    %v407 = vmul.f32 %v343, %v343
    %v408 = vmul.f32 %v348, %v348
    %v409 = vmul.f32 %v351, %v351
    %v410 = vmul.f32 %v356, %v356
    %v411 = vmul.f32 %v359, %v359
    %v412 = vmul.f32 %v364, %v364
    %v413 = vmul.f32 %v367, %v367
    %v414 = vmul.f32 %v372, %v372
    %v415 = vmul.f32 %v375, %v375
    %v416 = vmul.f32 %v380, %v380
    %v417 = vmul.f32 %v383, %v383
    %v418 = vmul.f32 %v260, %v386
    %v419 = vmul.f32 %v263, %v387
    %v420 = vmul.f32 %v268, %v388
    %v421 = vmul.f32 %v271, %v389
    %v422 = vmul.f32 %v276, %v390
    %v423 = vmul.f32 %v279, %v391
    %v424 = vmul.f32 %v284, %v392
    %v425 = vmul.f32 %v287, %v393
    %v426 = vmul.f32 %v292, %v394
    %v427 = vmul.f32 %v295, %v395
    %v428 = vmul.f32 %v300, %v396
    %v429 = vmul.f32 %v303, %v397
    %v430 = vmul.f32 %v308, %v398
    %v431 = vmul.f32 %v311, %v399
    %v432 = vmul.f32 %v316, %v400
    %v433 = vmul.f32 %v319, %v401
    %v434 = vmul.f32 %v324, %v402
    %v435 = vmul.f32 %v327, %v403
    %v436 = vmul.f32 %v332, %v404
    %v437 = vmul.f32 %v335, %v405
    %v438 = vmul.f32 %v340, %v406
    %v439 = vmul.f32 %v343, %v407
    %v440 = vmul.f32 %v348, %v408
    %v441 = vmul.f32 %v351, %v409
    %v442 = vmul.f32 %v356, %v410
    %v443 = vmul.f32 %v359, %v411
    %v444 = vmul.f32 %v364, %v412
    %v445 = vmul.f32 %v367, %v413
    %v446 = vmul.f32 %v372, %v414
    %v447 = vmul.f32 %v375, %v415
    %v448 = vmul.f32 %v380, %v416
    %v449 = vmul.f32 %v383, %v417
    %v450 = vmul.f32 %v418, 0.044715
    %v451 = vmul.f32 %v419, 0.044715
    %v452 = vmul.f32 %v420, 0.044715
    %v453 = vmul.f32 %v421, 0.044715
    %v454 = vmul.f32 %v422, 0.044715
    %v455 = vmul.f32 %v423, 0.044715
    %v456 = vmul.f32 %v424, 0.044715
    %v457 = vmul.f32 %v425, 0.044715
    %v458 = vmul.f32 %v426, 0.044715
    %v459 = vmul.f32 %v427, 0.044715
    %v460 = vmul.f32 %v428, 0.044715
    %v461 = vmul.f32 %v429, 0.044715
    %v462 = vmul.f32 %v430, 0.044715
    %v463 = vmul.f32 %v431, 0.044715
    %v464 = vmul.f32 %v432, 0.044715
    %v465 = vmul.f32 %v433, 0.044715
    %v466 = vmul.f32 %v434, 0.044715
    %v467 = vmul.f32 %v435, 0.044715
    %v468 = vmul.f32 %v436, 0.044715
    %v469 = vmul.f32 %v437, 0.044715
    %v470 = vmul.f32 %v438, 0.044715
    %v471 = vmul.f32 %v439, 0.044715
    %v472 = vmul.f32 %v440, 0.044715
    %v473 = vmul.f32 %v441, 0.044715
    %v474 = vmul.f32 %v442, 0.044715
    %v475 = vmul.f32 %v443, 0.044715
    %v476 = vmul.f32 %v444, 0.044715
    %v477 = vmul.f32 %v445, 0.044715
    %v478 = vmul.f32 %v446, 0.044715
    %v479 = vmul.f32 %v447, 0.044715
    %v480 = vmul.f32 %v448, 0.044715
    %v481 = vmul.f32 %v449, 0.044715
    %v482 = vadd.f32 %v260, %v450
    %v483 = vadd.f32 %v263, %v451
    %v484 = vadd.f32 %v268, %v452
    %v485 = vadd.f32 %v271, %v453
    %v486 = vadd.f32 %v276, %v454
    %v487 = vadd.f32 %v279, %v455
    %v488 = vadd.f32 %v284, %v456
    %v489 = vadd.f32 %v287, %v457
    %v490 = vadd.f32 %v292, %v458
    %v491 = vadd.f32 %v295, %v459
    %v492 = vadd.f32 %v300, %v460
    %v493 = vadd.f32 %v303, %v461
    %v494 = vadd.f32 %v308, %v462
    %v495 = vadd.f32 %v311, %v463
    %v496 = vadd.f32 %v316, %v464
    %v497 = vadd.f32 %v319, %v465
    %v498 = vadd.f32 %v324, %v466
    %v499 = vadd.f32 %v327, %v467
    %v500 = vadd.f32 %v332, %v468
    %v501 = vadd.f32 %v335, %v469
    %v502 = vadd.f32 %v340, %v470
    %v503 = vadd.f32 %v343, %v471
    %v504 = vadd.f32 %v348, %v472
    %v505 = vadd.f32 %v351, %v473
    %v506 = vadd.f32 %v356, %v474
    %v507 = vadd.f32 %v359, %v475
    %v508 = vadd.f32 %v364, %v476
    %v509 = vadd.f32 %v367, %v477
    %v510 = vadd.f32 %v372, %v478
    %v511 = vadd.f32 %v375, %v479
    %v512 = vadd.f32 %v380, %v480
    %v513 = vadd.f32 %v383, %v481
    %v514 = vmul.f32 %v482, 0.7978846
    %v515 = vmul.f32 %v483, 0.7978846
    %v516 = vmul.f32 %v484, 0.7978846
    %v517 = vmul.f32 %v485, 0.7978846
    %v518 = vmul.f32 %v486, 0.7978846
    %v519 = vmul.f32 %v487, 0.7978846
    %v520 = vmul.f32 %v488, 0.7978846
    %v521 = vmul.f32 %v489, 0.7978846
    %v522 = vmul.f32 %v490, 0.7978846
    %v523 = vmul.f32 %v491, 0.7978846
    %v524 = vmul.f32 %v492, 0.7978846
    %v525 = vmul.f32 %v493, 0.7978846
    %v526 = vmul.f32 %v494, 0.7978846
    %v527 = vmul.f32 %v495, 0.7978846
    %v528 = vmul.f32 %v496, 0.7978846
    %v529 = vmul.f32 %v497, 0.7978846
    %v530 = vmul.f32 %v498, 0.7978846
    %v531 = vmul.f32 %v499, 0.7978846
    %v532 = vmul.f32 %v500, 0.7978846
    %v533 = vmul.f32 %v501, 0.7978846
    %v534 = vmul.f32 %v502, 0.7978846
    %v535 = vmul.f32 %v503, 0.7978846
    %v536 = vmul.f32 %v504, 0.7978846
    %v537 = vmul.f32 %v505, 0.7978846
    %v538 = vmul.f32 %v506, 0.7978846
    %v539 = vmul.f32 %v507, 0.7978846
    %v540 = vmul.f32 %v508, 0.7978846
    %v541 = vmul.f32 %v509, 0.7978846
    %v542 = vmul.f32 %v510, 0.7978846
    %v543 = vmul.f32 %v511, 0.7978846
    %v544 = vmul.f32 %v512, 0.7978846
    %v545 = vmul.f32 %v513, 0.7978846
    %v546 = vtanh.pop %v514
    %v547 = vtanh.pop %v515
    %v548 = vtanh.pop %v516
    %v549 = vtanh.pop %v517
    %v550 = vtanh.pop %v518
    %v551 = vtanh.pop %v519
    %v552 = vtanh.pop %v520
    %v553 = vtanh.pop %v521
    %v554 = vtanh.pop %v522
    %v555 = vtanh.pop %v523
    %v556 = vtanh.pop %v524
    %v557 = vtanh.pop %v525
    %v558 = vtanh.pop %v526
    %v559 = vtanh.pop %v527
    %v560 = vtanh.pop %v528
    %v561 = vtanh.pop %v529
    %v562 = vtanh.pop %v530
    %v563 = vtanh.pop %v531
    %v564 = vtanh.pop %v532
    %v565 = vtanh.pop %v533
    %v566 = vtanh.pop %v534
    %v567 = vtanh.pop %v535
    %v568 = vtanh.pop %v536
    %v569 = vtanh.pop %v537
    %v570 = vtanh.pop %v538
    %v571 = vtanh.pop %v539
    %v572 = vtanh.pop %v540
    %v573 = vtanh.pop %v541
    %v574 = vtanh.pop %v542
    %v575 = vtanh.pop %v543
    %v576 = vtanh.pop %v544
    %v577 = vtanh.pop %v545
    %v578 = vadd.f32 %v546, 1.0
    %v579 = vadd.f32 %v547, 1.0
    %v580 = vadd.f32 %v548, 1.0
    %v581 = vadd.f32 %v549, 1.0
    %v582 = vadd.f32 %v550, 1.0
    %v583 = vadd.f32 %v551, 1.0
    %v584 = vadd.f32 %v552, 1.0
    %v585 = vadd.f32 %v553, 1.0
    %v586 = vadd.f32 %v554, 1.0
    %v587 = vadd.f32 %v555, 1.0
    %v588 = vadd.f32 %v556, 1.0
    %v589 = vadd.f32 %v557, 1.0
    %v590 = vadd.f32 %v558, 1.0
    %v591 = vadd.f32 %v559, 1.0
    %v592 = vadd.f32 %v560, 1.0
    %v593 = vadd.f32 %v561, 1.0
    %v594 = vadd.f32 %v562, 1.0
    %v595 = vadd.f32 %v563, 1.0
    %v596 = vadd.f32 %v564, 1.0
    %v597 = vadd.f32 %v565, 1.0
    %v598 = vadd.f32 %v566, 1.0
    %v599 = vadd.f32 %v567, 1.0
    %v600 = vadd.f32 %v568, 1.0
    %v601 = vadd.f32 %v569, 1.0
    %v602 = vadd.f32 %v570, 1.0
    %v603 = vadd.f32 %v571, 1.0
    %v604 = vadd.f32 %v572, 1.0
    %v605 = vadd.f32 %v573, 1.0
    %v606 = vadd.f32 %v574, 1.0
    %v607 = vadd.f32 %v575, 1.0
    %v608 = vadd.f32 %v576, 1.0
    %v609 = vadd.f32 %v577, 1.0
    %v610 = vmul.f32 %v578, 0.5
    %v611 = vmul.f32 %v579, 0.5
    %v612 = vmul.f32 %v580, 0.5
    %v613 = vmul.f32 %v581, 0.5
    %v614 = vmul.f32 %v582, 0.5
    %v615 = vmul.f32 %v583, 0.5
    %v616 = vmul.f32 %v584, 0.5
    %v617 = vmul.f32 %v585, 0.5
    %v618 = vmul.f32 %v586, 0.5
    %v619 = vmul.f32 %v587, 0.5
    %v620 = vmul.f32 %v588, 0.5
    %v621 = vmul.f32 %v589, 0.5
    %v622 = vmul.f32 %v590, 0.5
    %v623 = vmul.f32 %v591, 0.5
    %v624 = vmul.f32 %v592, 0.5
    %v625 = vmul.f32 %v593, 0.5
    %v626 = vmul.f32 %v594, 0.5
    %v627 = vmul.f32 %v595, 0.5
    %v628 = vmul.f32 %v596, 0.5
    %v629 = vmul.f32 %v597, 0.5
    %v630 = vmul.f32 %v598, 0.5
    %v631 = vmul.f32 %v599, 0.5
    %v632 = vmul.f32 %v600, 0.5
    %v633 = vmul.f32 %v601, 0.5
    %v634 = vmul.f32 %v602, 0.5
    %v635 = vmul.f32 %v603, 0.5
    %v636 = vmul.f32 %v604, 0.5
    %v637 = vmul.f32 %v605, 0.5
    %v638 = vmul.f32 %v606, 0.5
    %v639 = vmul.f32 %v607, 0.5
    %v640 = vmul.f32 %v608, 0.5
    %v641 = vmul.f32 %v609, 0.5
    %v642 = vmul.f32 %v260, %v610
    %v643 = vmul.f32 %v263, %v611
    %v644 = vmul.f32 %v268, %v612
    %v645 = vmul.f32 %v271, %v613
    %v646 = vmul.f32 %v276, %v614
    %v647 = vmul.f32 %v279, %v615
    %v648 = vmul.f32 %v284, %v616
    %v649 = vmul.f32 %v287, %v617
    %v650 = vmul.f32 %v292, %v618
    %v651 = vmul.f32 %v295, %v619
    %v652 = vmul.f32 %v300, %v620
    %v653 = vmul.f32 %v303, %v621
    %v654 = vmul.f32 %v308, %v622
    %v655 = vmul.f32 %v311, %v623
    %v656 = vmul.f32 %v316, %v624
    %v657 = vmul.f32 %v319, %v625
    %v658 = vmul.f32 %v324, %v626
    %v659 = vmul.f32 %v327, %v627
    %v660 = vmul.f32 %v332, %v628
    %v661 = vmul.f32 %v335, %v629
    %v662 = vmul.f32 %v340, %v630
    %v663 = vmul.f32 %v343, %v631
    %v664 = vmul.f32 %v348, %v632
    %v665 = vmul.f32 %v351, %v633
    %v666 = vmul.f32 %v356, %v634
    %v667 = vmul.f32 %v359, %v635
    %v668 = vmul.f32 %v364, %v636
    %v669 = vmul.f32 %v367, %v637
    %v670 = vmul.f32 %v372, %v638
    %v671 = vmul.f32 %v375, %v639
    %v672 = vmul.f32 %v380, %v640
    %v673 = vmul.f32 %v383, %v641
    %v674 = vpack.c.bf16 %v643, %v642
    %v675 = vpack.c.bf16 %v645, %v644
    %v676 = vpack.c.bf16 %v647, %v646
    %v677 = vpack.c.bf16 %v649, %v648
    %v678 = vpack.c.bf16 %v651, %v650
    %v679 = vpack.c.bf16 %v653, %v652
    %v680 = vpack.c.bf16 %v655, %v654
    %v681 = vpack.c.bf16 %v657, %v656
    %v682 = vpack.c.bf16 %v659, %v658
    %v683 = vpack.c.bf16 %v661, %v660
    %v684 = vpack.c.bf16 %v663, %v662
    %v685 = vpack.c.bf16 %v665, %v664
    %v686 = vpack.c.bf16 %v667, %v666
    %v687 = vpack.c.bf16 %v669, %v668
    %v688 = vpack.c.bf16 %v671, %v670
    %v689 = vpack.c.bf16 %v673, %v672
    %vm690 = vcmask 523264
    %691 = vst.msk [vmem:[#allocation2] sm:$0xff] %vm690, %v674
    %692 = vst.msk [vmem:[#allocation2 + $0x8] sm:$0xff] %vm690, %v675
    %693 = vst.msk [vmem:[#allocation2 + $0x10] sm:$0xff] %vm690, %v676
    %694 = vst.msk [vmem:[#allocation2 + $0x18] sm:$0xff] %vm690, %v677
    %695 = vst.msk [vmem:[#allocation2 + $0x20] sm:$0xff] %vm690, %v678
    %696 = vst.msk [vmem:[#allocation2 + $0x28] sm:$0xff] %vm690, %v679
    %697 = vst.msk [vmem:[#allocation2 + $0x30] sm:$0xff] %vm690, %v680
    %698 = vst.msk [vmem:[#allocation2 + $0x38] sm:$0xff] %vm690, %v681
    %699 = vst.msk [vmem:[#allocation2 + $0x40] sm:$0xff] %vm690, %v682
    %700 = vst.msk [vmem:[#allocation2 + $0x48] sm:$0xff] %vm690, %v683
    %701 = vst.msk [vmem:[#allocation2 + $0x50] sm:$0xff] %vm690, %v684
    %702 = vst.msk [vmem:[#allocation2 + $0x58] sm:$0xff] %vm690, %v685
    %703 = vst.msk [vmem:[#allocation2 + $0x60] sm:$0xff] %vm690, %v686
    %704 = vst.msk [vmem:[#allocation2 + $0x68] sm:$0xff] %vm690, %v687
    %705 = vst.msk [vmem:[#allocation2 + $0x70] sm:$0xff] %vm690, %v688
    %706 = vst.msk [vmem:[#allocation2 + $0x78] sm:$0xff] %vm690, %v689
    %v707 = vld [vmem:[%s5] sm:$0xf]
    %v708 = vld [vmem:[%s5 + $0x4] sm:$0xf]
    %v709 = vld [vmem:[%s5 + $0x8] sm:$0xf]
    %v710 = vld [vmem:[%s5 + $0xc] sm:$0xf]
    %v711 = vld [vmem:[%s6] sm:$0x1]
    %v713 = vlaneseq
    %v714 = vshrl.u32 %v713, 7
    %v715 = vsub.s32 0, %v714
    %v716 = vrot.slane %v711, %v715
    %v722 = vunpack.c.l.b16 %v707
    %v723 = vunpack.c.l.b16 %v708
    %v724 = vunpack.c.l.b16 %v709
    %v725 = vunpack.c.l.b16 %v710
    %v726 = vpack.c.b16 %v723, %v722
    %v727 = vpack.c.b16 %v725, %v724
    %730 = vmatprep.subr.bf16.mxu0 0
    %731 = vmatpush1.bf16.msra.mxu0 %v726
    %732 = vmatprep.subr.bf16.mxu0 0
    %733 = vmatpush1.bf16.msra.mxu0 %v727
    %734 = vmatprep.subr.bf16.mxu0 0
    %735 = vmatpush1.bf16.msra.mxu0 0
    %736 = vmatprep.subr.bf16.mxu0 0
    %737 = vmatpush1.bf16.msra.mxu0 0
    %738 = vmatprep.subr.bf16.mxu0 0
    %739 = vmatpush1.bf16.msra.mxu0 0
    %740 = vmatprep.subr.bf16.mxu0 0
    %741 = vmatpush1.bf16.msra.mxu0 0
    %742 = vmatprep.subr.bf16.mxu0 0
    %743 = vmatpush1.bf16.msra.mxu0 0
    %744 = vmatprep.subr.bf16.mxu0 0
    %745 = vmatpush1.bf16.msra.mxu0 0
    %746 = vmatprep.subr.bf16.mxu0 0
    %747 = vmatpush1.bf16.msra.mxu0 0
    %748 = vmatprep.subr.bf16.mxu0 0
    %749 = vmatpush1.bf16.msra.mxu0 0
    %750 = vmatprep.subr.bf16.mxu0 0
    %751 = vmatpush1.bf16.msra.mxu0 0
    %752 = vmatprep.subr.bf16.mxu0 0
    %753 = vmatpush1.bf16.msra.mxu0 0
    %754 = vmatprep.subr.bf16.mxu0 0
    %755 = vmatpush1.bf16.msra.mxu0 0
    %756 = vmatprep.subr.bf16.mxu0 0
    %757 = vmatpush1.bf16.msra.mxu0 0
    %758 = vmatprep.subr.bf16.mxu0 0
    %759 = vmatpush1.bf16.msra.mxu0 0
    %760 = vmatprep.subr.bf16.mxu0 0
    %761 = vmatpush1.bf16.msra.mxu0 0
    %762 = vmatprep.mubr.bf16.mxu0 0
    %763 = vmatmul.mubr.bf16.gmra.mrb[0].mxu0 %v178
    %v764 = vpop.f32.mrb[0].mxu0
    %v765 = vadd.f32 %v716, %v764
    %v766 = vpop.f32.mrb[0].mxu0
    %v767 = vpop.f32.mrb[0].mxu0
    %v768 = vadd.f32 %v716, %v767
    %v769 = vpop.f32.mrb[0].mxu0
    %770 = vmatprep.mubr.bf16.mxu0 0
    %771 = vmatmul.mubr.bf16.gmra.mrb[0].mxu0 %v181
    %v772 = vpop.f32.mrb[0].mxu0
    %v773 = vadd.f32 %v716, %v772
    %v774 = vpop.f32.mrb[0].mxu0
    %v775 = vpop.f32.mrb[0].mxu0
    %v776 = vadd.f32 %v716, %v775
    %v777 = vpop.f32.mrb[0].mxu0
    %778 = vmatprep.mubr.bf16.mxu0 0
    %779 = vmatmul.mubr.bf16.gmra.mrb[0].mxu0 %v184
    %v780 = vpop.f32.mrb[0].mxu0
    %v781 = vadd.f32 %v716, %v780
    %v782 = vpop.f32.mrb[0].mxu0
    %v783 = vpop.f32.mrb[0].mxu0
    %v784 = vadd.f32 %v716, %v783
    %v785 = vpop.f32.mrb[0].mxu0
    %786 = vmatprep.mubr.bf16.mxu0 0
    %787 = vmatmul.mubr.bf16.gmra.mrb[0].mxu0 %v187
    %v788 = vpop.f32.mrb[0].mxu0
    %v789 = vadd.f32 %v716, %v788
    %v790 = vpop.f32.mrb[0].mxu0
    %v791 = vpop.f32.mrb[0].mxu0
    %v792 = vadd.f32 %v716, %v791
    %v793 = vpop.f32.mrb[0].mxu0
    %794 = vmatprep.mubr.bf16.mxu0 0
    %795 = vmatmul.mubr.bf16.gmra.mrb[0].mxu0 %v190
    %v796 = vpop.f32.mrb[0].mxu0
    %v797 = vadd.f32 %v716, %v796
    %v798 = vpop.f32.mrb[0].mxu0
    %v799 = vpop.f32.mrb[0].mxu0
    %v800 = vadd.f32 %v716, %v799
    %v801 = vpop.f32.mrb[0].mxu0
    %802 = vmatprep.mubr.bf16.mxu0 0
    %803 = vmatmul.mubr.bf16.gmra.mrb[0].mxu0 %v193
    %v804 = vpop.f32.mrb[0].mxu0
    %v805 = vadd.f32 %v716, %v804
    %v806 = vpop.f32.mrb[0].mxu0
    %v807 = vpop.f32.mrb[0].mxu0
    %v808 = vadd.f32 %v716, %v807
    %v809 = vpop.f32.mrb[0].mxu0
    %810 = vmatprep.mubr.bf16.mxu0 0
    %811 = vmatmul.mubr.bf16.gmra.mrb[0].mxu0 %v196
    %v812 = vpop.f32.mrb[0].mxu0
    %v813 = vadd.f32 %v716, %v812
    %v814 = vpop.f32.mrb[0].mxu0
    %v815 = vpop.f32.mrb[0].mxu0
    %v816 = vadd.f32 %v716, %v815
    %v817 = vpop.f32.mrb[0].mxu0
    %818 = vmatprep.mubr.bf16.mxu0 0
    %819 = vmatmul.mubr.bf16.gmra.mrb[0].mxu0 %v199
    %v820 = vpop.f32.mrb[0].mxu0
    %v821 = vadd.f32 %v716, %v820
    %v822 = vpop.f32.mrb[0].mxu0
    %v823 = vpop.f32.mrb[0].mxu0
    %v824 = vadd.f32 %v716, %v823
    %v825 = vpop.f32.mrb[0].mxu0
    %826 = vmatprep.mubr.bf16.mxu0 0
    %827 = vmatmul.mubr.bf16.gmra.mrb[0].mxu0 %v202
    %v828 = vpop.f32.mrb[0].mxu0
    %v829 = vadd.f32 %v716, %v828
    %v830 = vpop.f32.mrb[0].mxu0
    %v831 = vpop.f32.mrb[0].mxu0
    %v832 = vadd.f32 %v716, %v831
    %v833 = vpop.f32.mrb[0].mxu0
    %834 = vmatprep.mubr.bf16.mxu0 0
    %835 = vmatmul.mubr.bf16.gmra.mrb[0].mxu0 %v205
    %v836 = vpop.f32.mrb[0].mxu0
    %v837 = vadd.f32 %v716, %v836
    %v838 = vpop.f32.mrb[0].mxu0
    %v839 = vpop.f32.mrb[0].mxu0
    %v840 = vadd.f32 %v716, %v839
    %v841 = vpop.f32.mrb[0].mxu0
    %842 = vmatprep.mubr.bf16.mxu0 0
    %843 = vmatmul.mubr.bf16.gmra.mrb[0].mxu0 %v208
    %v844 = vpop.f32.mrb[0].mxu0
    %v845 = vadd.f32 %v716, %v844
    %v846 = vpop.f32.mrb[0].mxu0
    %v847 = vpop.f32.mrb[0].mxu0
    %v848 = vadd.f32 %v716, %v847
    %v849 = vpop.f32.mrb[0].mxu0
    %850 = vmatprep.mubr.bf16.mxu0 0
    %851 = vmatmul.mubr.bf16.gmra.mrb[0].mxu0 %v211
    %v852 = vpop.f32.mrb[0].mxu0
    %v853 = vadd.f32 %v716, %v852
    %v854 = vpop.f32.mrb[0].mxu0
    %v855 = vpop.f32.mrb[0].mxu0
    %v856 = vadd.f32 %v716, %v855
    %v857 = vpop.f32.mrb[0].mxu0
    %858 = vmatprep.mubr.bf16.mxu0 0
    %859 = vmatmul.mubr.bf16.gmra.mrb[0].mxu0 %v214
    %v860 = vpop.f32.mrb[0].mxu0
    %v861 = vadd.f32 %v716, %v860
    %v862 = vpop.f32.mrb[0].mxu0
    %v863 = vpop.f32.mrb[0].mxu0
    %v864 = vadd.f32 %v716, %v863
    %v865 = vpop.f32.mrb[0].mxu0
    %866 = vmatprep.mubr.bf16.mxu0 0
    %867 = vmatmul.mubr.bf16.gmra.mrb[0].mxu0 %v217
    %v868 = vpop.f32.mrb[0].mxu0
    %v869 = vadd.f32 %v716, %v868
    %v870 = vpop.f32.mrb[0].mxu0
    %v871 = vpop.f32.mrb[0].mxu0
    %v872 = vadd.f32 %v716, %v871
    %v873 = vpop.f32.mrb[0].mxu0
    %874 = vmatprep.mubr.bf16.mxu0 0
    %875 = vmatmul.mubr.bf16.gmra.mrb[0].mxu0 %v220
    %v876 = vpop.f32.mrb[0].mxu0
    %v877 = vadd.f32 %v716, %v876
    %v878 = vpop.f32.mrb[0].mxu0
    %v879 = vpop.f32.mrb[0].mxu0
    %v880 = vadd.f32 %v716, %v879
    %v881 = vpop.f32.mrb[0].mxu0
    %882 = vmatprep.mubr.bf16.mxu0 0
    %883 = vmatmul.mubr.bf16.gmra.mrb[0].mxu0 %v223
    %v884 = vpop.f32.mrb[0].mxu0
    %v885 = vadd.f32 %v716, %v884
    %v886 = vpop.f32.mrb[0].mxu0
    %v887 = vpop.f32.mrb[0].mxu0
    %v888 = vadd.f32 %v716, %v887
    %v889 = vpop.f32.mrb[0].mxu0
    %890 = vdwg.mxu0
    %v891 = vmul.f32 %v765, %v765
    %v892 = vmul.f32 %v768, %v768
    %v893 = vmul.f32 %v773, %v773
    %v894 = vmul.f32 %v776, %v776
    %v895 = vmul.f32 %v781, %v781
    %v896 = vmul.f32 %v784, %v784
    %v897 = vmul.f32 %v789, %v789
    %v898 = vmul.f32 %v792, %v792
    %v899 = vmul.f32 %v797, %v797
    %v900 = vmul.f32 %v800, %v800
    %v901 = vmul.f32 %v805, %v805
    %v902 = vmul.f32 %v808, %v808
    %v903 = vmul.f32 %v813, %v813
    %v904 = vmul.f32 %v816, %v816
    %v905 = vmul.f32 %v821, %v821
    %v906 = vmul.f32 %v824, %v824
    %v907 = vmul.f32 %v829, %v829
    %v908 = vmul.f32 %v832, %v832
    %v909 = vmul.f32 %v837, %v837
    %v910 = vmul.f32 %v840, %v840
    %v911 = vmul.f32 %v845, %v845
    %v912 = vmul.f32 %v848, %v848
    %v913 = vmul.f32 %v853, %v853
    %v914 = vmul.f32 %v856, %v856
    %v915 = vmul.f32 %v861, %v861
    %v916 = vmul.f32 %v864, %v864
    %v917 = vmul.f32 %v869, %v869
    %v918 = vmul.f32 %v872, %v872
    %v919 = vmul.f32 %v877, %v877
    %v920 = vmul.f32 %v880, %v880
    %v921 = vmul.f32 %v885, %v885
    %v922 = vmul.f32 %v888, %v888
    %v923 = vmul.f32 %v765, %v891
    %v924 = vmul.f32 %v768, %v892
    %v925 = vmul.f32 %v773, %v893
    %v926 = vmul.f32 %v776, %v894
    %v927 = vmul.f32 %v781, %v895
    %v928 = vmul.f32 %v784, %v896
    %v929 = vmul.f32 %v789, %v897
    %v930 = vmul.f32 %v792, %v898
    %v931 = vmul.f32 %v797, %v899
    %v932 = vmul.f32 %v800, %v900
    %v933 = vmul.f32 %v805, %v901
    %v934 = vmul.f32 %v808, %v902
    %v935 = vmul.f32 %v813, %v903
    %v936 = vmul.f32 %v816, %v904
    %v937 = vmul.f32 %v821, %v905
    %v938 = vmul.f32 %v824, %v906
    %v939 = vmul.f32 %v829, %v907
    %v940 = vmul.f32 %v832, %v908
    %v941 = vmul.f32 %v837, %v909
    %v942 = vmul.f32 %v840, %v910
    %v943 = vmul.f32 %v845, %v911
    %v944 = vmul.f32 %v848, %v912
    %v945 = vmul.f32 %v853, %v913
    %v946 = vmul.f32 %v856, %v914
    %v947 = vmul.f32 %v861, %v915
    %v948 = vmul.f32 %v864, %v916
    %v949 = vmul.f32 %v869, %v917
    %v950 = vmul.f32 %v872, %v918
    %v951 = vmul.f32 %v877, %v919
    %v952 = vmul.f32 %v880, %v920
    %v953 = vmul.f32 %v885, %v921
    %v954 = vmul.f32 %v888, %v922
    %v955 = vmul.f32 %v923, 0.044715
    %v956 = vmul.f32 %v924, 0.044715
    %v957 = vmul.f32 %v925, 0.044715
    %v958 = vmul.f32 %v926, 0.044715
    %v959 = vmul.f32 %v927, 0.044715
    %v960 = vmul.f32 %v928, 0.044715
    %v961 = vmul.f32 %v929, 0.044715
    %v962 = vmul.f32 %v930, 0.044715
    %v963 = vmul.f32 %v931, 0.044715
    %v964 = vmul.f32 %v932, 0.044715
    %v965 = vmul.f32 %v933, 0.044715
    %v966 = vmul.f32 %v934, 0.044715
    %v967 = vmul.f32 %v935, 0.044715
    %v968 = vmul.f32 %v936, 0.044715
    %v969 = vmul.f32 %v937, 0.044715
    %v970 = vmul.f32 %v938, 0.044715
    %v971 = vmul.f32 %v939, 0.044715
    %v972 = vmul.f32 %v940, 0.044715
    %v973 = vmul.f32 %v941, 0.044715
    %v974 = vmul.f32 %v942, 0.044715
    %v975 = vmul.f32 %v943, 0.044715
    %v976 = vmul.f32 %v944, 0.044715
    %v977 = vmul.f32 %v945, 0.044715
    %v978 = vmul.f32 %v946, 0.044715
    %v979 = vmul.f32 %v947, 0.044715
    %v980 = vmul.f32 %v948, 0.044715
    %v981 = vmul.f32 %v949, 0.044715
    %v982 = vmul.f32 %v950, 0.044715
    %v983 = vmul.f32 %v951, 0.044715
    %v984 = vmul.f32 %v952, 0.044715
    %v985 = vmul.f32 %v953, 0.044715
    %v986 = vmul.f32 %v954, 0.044715
    %v987 = vadd.f32 %v765, %v955
    %v988 = vadd.f32 %v768, %v956
    %v989 = vadd.f32 %v773, %v957
    %v990 = vadd.f32 %v776, %v958
    %v991 = vadd.f32 %v781, %v959
    %v992 = vadd.f32 %v784, %v960
    %v993 = vadd.f32 %v789, %v961
    %v994 = vadd.f32 %v792, %v962
    %v995 = vadd.f32 %v797, %v963
    %v996 = vadd.f32 %v800, %v964
    %v997 = vadd.f32 %v805, %v965
    %v998 = vadd.f32 %v808, %v966
    %v999 = vadd.f32 %v813, %v967
    %v1000 = vadd.f32 %v816, %v968
    %v1001 = vadd.f32 %v821, %v969
    %v1002 = vadd.f32 %v824, %v970
    %v1003 = vadd.f32 %v829, %v971
    %v1004 = vadd.f32 %v832, %v972
    %v1005 = vadd.f32 %v837, %v973
    %v1006 = vadd.f32 %v840, %v974
    %v1007 = vadd.f32 %v845, %v975
    %v1008 = vadd.f32 %v848, %v976
    %v1009 = vadd.f32 %v853, %v977
    %v1010 = vadd.f32 %v856, %v978
    %v1011 = vadd.f32 %v861, %v979
    %v1012 = vadd.f32 %v864, %v980
    %v1013 = vadd.f32 %v869, %v981
    %v1014 = vadd.f32 %v872, %v982
    %v1015 = vadd.f32 %v877, %v983
    %v1016 = vadd.f32 %v880, %v984
    %v1017 = vadd.f32 %v885, %v985
    %v1018 = vadd.f32 %v888, %v986
    %v1019 = vmul.f32 %v987, 0.7978846
    %v1020 = vmul.f32 %v988, 0.7978846
    %v1021 = vmul.f32 %v989, 0.7978846
    %v1022 = vmul.f32 %v990, 0.7978846
    %v1023 = vmul.f32 %v991, 0.7978846
    %v1024 = vmul.f32 %v992, 0.7978846
    %v1025 = vmul.f32 %v993, 0.7978846
    %v1026 = vmul.f32 %v994, 0.7978846
    %v1027 = vmul.f32 %v995, 0.7978846
    %v1028 = vmul.f32 %v996, 0.7978846
    %v1029 = vmul.f32 %v997, 0.7978846
    %v1030 = vmul.f32 %v998, 0.7978846
    %v1031 = vmul.f32 %v999, 0.7978846
    %v1032 = vmul.f32 %v1000, 0.7978846
    %v1033 = vmul.f32 %v1001, 0.7978846
    %v1034 = vmul.f32 %v1002, 0.7978846
    %v1035 = vmul.f32 %v1003, 0.7978846
    %v1036 = vmul.f32 %v1004, 0.7978846
    %v1037 = vmul.f32 %v1005, 0.7978846
    %v1038 = vmul.f32 %v1006, 0.7978846
    %v1039 = vmul.f32 %v1007, 0.7978846
    %v1040 = vmul.f32 %v1008, 0.7978846
    %v1041 = vmul.f32 %v1009, 0.7978846
    %v1042 = vmul.f32 %v1010, 0.7978846
    %v1043 = vmul.f32 %v1011, 0.7978846
    %v1044 = vmul.f32 %v1012, 0.7978846
    %v1045 = vmul.f32 %v1013, 0.7978846
    %v1046 = vmul.f32 %v1014, 0.7978846
    %v1047 = vmul.f32 %v1015, 0.7978846
    %v1048 = vmul.f32 %v1016, 0.7978846
    %v1049 = vmul.f32 %v1017, 0.7978846
    %v1050 = vmul.f32 %v1018, 0.7978846
    %v1051 = vtanh.pop %v1019
    %v1052 = vtanh.pop %v1020
    %v1053 = vtanh.pop %v1021
    %v1054 = vtanh.pop %v1022
    %v1055 = vtanh.pop %v1023
    %v1056 = vtanh.pop %v1024
    %v1057 = vtanh.pop %v1025
    %v1058 = vtanh.pop %v1026
    %v1059 = vtanh.pop %v1027
    %v1060 = vtanh.pop %v1028
    %v1061 = vtanh.pop %v1029
    %v1062 = vtanh.pop %v1030
    %v1063 = vtanh.pop %v1031
    %v1064 = vtanh.pop %v1032
    %v1065 = vtanh.pop %v1033
    %v1066 = vtanh.pop %v1034
    %v1067 = vtanh.pop %v1035
    %v1068 = vtanh.pop %v1036
    %v1069 = vtanh.pop %v1037
    %v1070 = vtanh.pop %v1038
    %v1071 = vtanh.pop %v1039
    %v1072 = vtanh.pop %v1040
    %v1073 = vtanh.pop %v1041
    %v1074 = vtanh.pop %v1042
    %v1075 = vtanh.pop %v1043
    %v1076 = vtanh.pop %v1044
    %v1077 = vtanh.pop %v1045
    %v1078 = vtanh.pop %v1046
    %v1079 = vtanh.pop %v1047
    %v1080 = vtanh.pop %v1048
    %v1081 = vtanh.pop %v1049
    %v1082 = vtanh.pop %v1050
    %v1083 = vadd.f32 %v1051, 1.0
    %v1084 = vadd.f32 %v1052, 1.0
    %v1085 = vadd.f32 %v1053, 1.0
    %v1086 = vadd.f32 %v1054, 1.0
    %v1087 = vadd.f32 %v1055, 1.0
    %v1088 = vadd.f32 %v1056, 1.0
    %v1089 = vadd.f32 %v1057, 1.0
    %v1090 = vadd.f32 %v1058, 1.0
    %v1091 = vadd.f32 %v1059, 1.0
    %v1092 = vadd.f32 %v1060, 1.0
    %v1093 = vadd.f32 %v1061, 1.0
    %v1094 = vadd.f32 %v1062, 1.0
    %v1095 = vadd.f32 %v1063, 1.0
    %v1096 = vadd.f32 %v1064, 1.0
    %v1097 = vadd.f32 %v1065, 1.0
    %v1098 = vadd.f32 %v1066, 1.0
    %v1099 = vadd.f32 %v1067, 1.0
    %v1100 = vadd.f32 %v1068, 1.0
    %v1101 = vadd.f32 %v1069, 1.0
    %v1102 = vadd.f32 %v1070, 1.0
    %v1103 = vadd.f32 %v1071, 1.0
    %v1104 = vadd.f32 %v1072, 1.0
    %v1105 = vadd.f32 %v1073, 1.0
    %v1106 = vadd.f32 %v1074, 1.0
    %v1107 = vadd.f32 %v1075, 1.0
    %v1108 = vadd.f32 %v1076, 1.0
    %v1109 = vadd.f32 %v1077, 1.0
    %v1110 = vadd.f32 %v1078, 1.0
    %v1111 = vadd.f32 %v1079, 1.0
    %v1112 = vadd.f32 %v1080, 1.0
    %v1113 = vadd.f32 %v1081, 1.0
    %v1114 = vadd.f32 %v1082, 1.0
    %v1115 = vmul.f32 %v1083, 0.5
    %v1116 = vmul.f32 %v1084, 0.5
    %v1117 = vmul.f32 %v1085, 0.5
    %v1118 = vmul.f32 %v1086, 0.5
    %v1119 = vmul.f32 %v1087, 0.5
    %v1120 = vmul.f32 %v1088, 0.5
    %v1121 = vmul.f32 %v1089, 0.5
    %v1122 = vmul.f32 %v1090, 0.5
    %v1123 = vmul.f32 %v1091, 0.5
    %v1124 = vmul.f32 %v1092, 0.5
    %v1125 = vmul.f32 %v1093, 0.5
    %v1126 = vmul.f32 %v1094, 0.5
    %v1127 = vmul.f32 %v1095, 0.5
    %v1128 = vmul.f32 %v1096, 0.5
    %v1129 = vmul.f32 %v1097, 0.5
    %v1130 = vmul.f32 %v1098, 0.5
    %v1131 = vmul.f32 %v1099, 0.5
    %v1132 = vmul.f32 %v1100, 0.5
    %v1133 = vmul.f32 %v1101, 0.5
    %v1134 = vmul.f32 %v1102, 0.5
    %v1135 = vmul.f32 %v1103, 0.5
    %v1136 = vmul.f32 %v1104, 0.5
    %v1137 = vmul.f32 %v1105, 0.5
    %v1138 = vmul.f32 %v1106, 0.5
    %v1139 = vmul.f32 %v1107, 0.5
    %v1140 = vmul.f32 %v1108, 0.5
    %v1141 = vmul.f32 %v1109, 0.5
    %v1142 = vmul.f32 %v1110, 0.5
    %v1143 = vmul.f32 %v1111, 0.5
    %v1144 = vmul.f32 %v1112, 0.5
    %v1145 = vmul.f32 %v1113, 0.5
    %v1146 = vmul.f32 %v1114, 0.5
    %v1147 = vmul.f32 %v765, %v1115
    %v1148 = vmul.f32 %v768, %v1116
    %v1149 = vmul.f32 %v773, %v1117
    %v1150 = vmul.f32 %v776, %v1118
    %v1151 = vmul.f32 %v781, %v1119
    %v1152 = vmul.f32 %v784, %v1120
    %v1153 = vmul.f32 %v789, %v1121
    %v1154 = vmul.f32 %v792, %v1122
    %v1155 = vmul.f32 %v797, %v1123
    %v1156 = vmul.f32 %v800, %v1124
    %v1157 = vmul.f32 %v805, %v1125
    %v1158 = vmul.f32 %v808, %v1126
    %v1159 = vmul.f32 %v813, %v1127
    %v1160 = vmul.f32 %v816, %v1128
    %v1161 = vmul.f32 %v821, %v1129
    %v1162 = vmul.f32 %v824, %v1130
    %v1163 = vmul.f32 %v829, %v1131
    %v1164 = vmul.f32 %v832, %v1132
    %v1165 = vmul.f32 %v837, %v1133
    %v1166 = vmul.f32 %v840, %v1134
    %v1167 = vmul.f32 %v845, %v1135
    %v1168 = vmul.f32 %v848, %v1136
    %v1169 = vmul.f32 %v853, %v1137
    %v1170 = vmul.f32 %v856, %v1138
    %v1171 = vmul.f32 %v861, %v1139
    %v1172 = vmul.f32 %v864, %v1140
    %v1173 = vmul.f32 %v869, %v1141
    %v1174 = vmul.f32 %v872, %v1142
    %v1175 = vmul.f32 %v877, %v1143
    %v1176 = vmul.f32 %v880, %v1144
    %v1177 = vmul.f32 %v885, %v1145
    %v1178 = vmul.f32 %v888, %v1146
    %v1179 = vld [vmem:[%s7] sm:$0x1]
    %v1180 = vunpack.c.l.bf16 %v1179
    %v1181 = vlaneseq
    %v1182 = vshrl.u32 %v1181, 7
    %v1183 = vsub.s32 0, %v1182
    %v1184 = vrot.slane %v1180, %v1183
    %v1185 = vmul.f32 %v1147, %v1184
    %v1186 = vmul.f32 %v1148, %v1184
    %v1187 = vmul.f32 %v1149, %v1184
    %v1188 = vmul.f32 %v1150, %v1184
    %v1189 = vmul.f32 %v1151, %v1184
    %v1190 = vmul.f32 %v1152, %v1184
    %v1191 = vmul.f32 %v1153, %v1184
    %v1192 = vmul.f32 %v1154, %v1184
    %v1193 = vmul.f32 %v1155, %v1184
    %v1194 = vmul.f32 %v1156, %v1184
    %v1195 = vmul.f32 %v1157, %v1184
    %v1196 = vmul.f32 %v1158, %v1184
    %v1197 = vmul.f32 %v1159, %v1184
    %v1198 = vmul.f32 %v1160, %v1184
    %v1199 = vmul.f32 %v1161, %v1184
    %v1200 = vmul.f32 %v1162, %v1184
    %v1201 = vmul.f32 %v1163, %v1184
    %v1202 = vmul.f32 %v1164, %v1184
    %v1203 = vmul.f32 %v1165, %v1184
    %v1204 = vmul.f32 %v1166, %v1184
    %v1205 = vmul.f32 %v1167, %v1184
    %v1206 = vmul.f32 %v1168, %v1184
    %v1207 = vmul.f32 %v1169, %v1184
    %v1208 = vmul.f32 %v1170, %v1184
    %v1209 = vmul.f32 %v1171, %v1184
    %v1210 = vmul.f32 %v1172, %v1184
    %v1211 = vmul.f32 %v1173, %v1184
    %v1212 = vmul.f32 %v1174, %v1184
    %v1213 = vmul.f32 %v1175, %v1184
    %v1214 = vmul.f32 %v1176, %v1184
    %v1215 = vmul.f32 %v1177, %v1184
    %v1216 = vmul.f32 %v1178, %v1184
    %v1217 = vsel %vm690, %v1185, 0.0
    %1218 = vadd.xlane.f32.xlu0 %v1217
    %v1219 = vpop.xlane.xlu0 %1218
    %v1220 = vsel %vm690, %v1186, 0.0
    %1221 = vadd.xlane.f32.xlu0 %v1220
    %v1222 = vpop.xlane.xlu0 %1221
    %v1223 = vsel %vm690, %v1187, 0.0
    %1224 = vadd.xlane.f32.xlu0 %v1223
    %v1225 = vpop.xlane.xlu0 %1224
    %v1226 = vsel %vm690, %v1188, 0.0
    %1227 = vadd.xlane.f32.xlu0 %v1226
    %v1228 = vpop.xlane.xlu0 %1227
    %v1229 = vsel %vm690, %v1189, 0.0
    %1230 = vadd.xlane.f32.xlu0 %v1229
    %v1231 = vpop.xlane.xlu0 %1230
    %v1232 = vsel %vm690, %v1190, 0.0
    %1233 = vadd.xlane.f32.xlu0 %v1232
    %v1234 = vpop.xlane.xlu0 %1233
    %v1235 = vsel %vm690, %v1191, 0.0
    %1236 = vadd.xlane.f32.xlu0 %v1235
    %v1237 = vpop.xlane.xlu0 %1236
    %v1238 = vsel %vm690, %v1192, 0.0
    %1239 = vadd.xlane.f32.xlu0 %v1238
    %v1240 = vpop.xlane.xlu0 %1239
    %v1241 = vsel %vm690, %v1193, 0.0
    %1242 = vadd.xlane.f32.xlu0 %v1241
    %v1243 = vpop.xlane.xlu0 %1242
    %v1244 = vsel %vm690, %v1194, 0.0
    %1245 = vadd.xlane.f32.xlu0 %v1244
    %v1246 = vpop.xlane.xlu0 %1245
    %v1247 = vsel %vm690, %v1195, 0.0
    %1248 = vadd.xlane.f32.xlu0 %v1247
    %v1249 = vpop.xlane.xlu0 %1248
    %v1250 = vsel %vm690, %v1196, 0.0
    %1251 = vadd.xlane.f32.xlu0 %v1250
    %v1252 = vpop.xlane.xlu0 %1251
    %v1253 = vsel %vm690, %v1197, 0.0
    %1254 = vadd.xlane.f32.xlu0 %v1253
    %v1255 = vpop.xlane.xlu0 %1254
    %v1256 = vsel %vm690, %v1198, 0.0
    %1257 = vadd.xlane.f32.xlu0 %v1256
    %v1258 = vpop.xlane.xlu0 %1257
    %v1259 = vsel %vm690, %v1199, 0.0
    %1260 = vadd.xlane.f32.xlu0 %v1259
    %v1261 = vpop.xlane.xlu0 %1260
    %v1262 = vsel %vm690, %v1200, 0.0
    %1263 = vadd.xlane.f32.xlu0 %v1262
    %v1264 = vpop.xlane.xlu0 %1263
    %v1265 = vsel %vm690, %v1201, 0.0
    %1266 = vadd.xlane.f32.xlu0 %v1265
    %v1267 = vpop.xlane.xlu0 %1266
    %v1268 = vsel %vm690, %v1202, 0.0
    %1269 = vadd.xlane.f32.xlu0 %v1268
    %v1270 = vpop.xlane.xlu0 %1269
    %v1271 = vsel %vm690, %v1203, 0.0
    %1272 = vadd.xlane.f32.xlu0 %v1271
    %v1273 = vpop.xlane.xlu0 %1272
    %v1274 = vsel %vm690, %v1204, 0.0
    %1275 = vadd.xlane.f32.xlu0 %v1274
    %v1276 = vpop.xlane.xlu0 %1275
    %v1277 = vsel %vm690, %v1205, 0.0
    %1278 = vadd.xlane.f32.xlu0 %v1277
    %v1279 = vpop.xlane.xlu0 %1278
    %v1280 = vsel %vm690, %v1206, 0.0
    %1281 = vadd.xlane.f32.xlu0 %v1280
    %v1282 = vpop.xlane.xlu0 %1281
    %v1283 = vsel %vm690, %v1207, 0.0
    %1284 = vadd.xlane.f32.xlu0 %v1283
    %v1285 = vpop.xlane.xlu0 %1284
    %v1286 = vsel %vm690, %v1208, 0.0
    %1287 = vadd.xlane.f32.xlu0 %v1286
    %v1288 = vpop.xlane.xlu0 %1287
    %v1289 = vsel %vm690, %v1209, 0.0
    %1290 = vadd.xlane.f32.xlu0 %v1289
    %v1291 = vpop.xlane.xlu0 %1290
    %v1292 = vsel %vm690, %v1210, 0.0
    %1293 = vadd.xlane.f32.xlu0 %v1292
    %v1294 = vpop.xlane.xlu0 %1293
    %v1295 = vsel %vm690, %v1211, 0.0
    %1296 = vadd.xlane.f32.xlu0 %v1295
    %v1297 = vpop.xlane.xlu0 %1296
    %v1298 = vsel %vm690, %v1212, 0.0
    %1299 = vadd.xlane.f32.xlu0 %v1298
    %v1300 = vpop.xlane.xlu0 %1299
    %v1301 = vsel %vm690, %v1213, 0.0
    %1302 = vadd.xlane.f32.xlu0 %v1301
    %v1303 = vpop.xlane.xlu0 %1302
    %v1304 = vsel %vm690, %v1214, 0.0
    %1305 = vadd.xlane.f32.xlu0 %v1304
    %v1306 = vpop.xlane.xlu0 %1305
    %v1307 = vsel %vm690, %v1215, 0.0
    %1308 = vadd.xlane.f32.xlu0 %v1307
    %v1309 = vpop.xlane.xlu0 %1308
    %v1310 = vsel %vm690, %v1216, 0.0
    %1311 = vadd.xlane.f32.xlu0 %v1310
    %v1312 = vpop.xlane.xlu0 %1311
    %v1313 = vld [vmem:[#allocation3] sm:$0x1]
    %v1315 = vlaneseq
    %v1316 = vshrl.u32 %v1315, 7
    %v1317 = vsub.s32 0, %v1316
    %v1318 = vrot.slane %v1313, %v1317
    %v1320 = vadd.f32 %v1219, %v1318
    %v1321 = vadd.f32 %v1222, %v1318
    %v1322 = vadd.f32 %v1225, %v1318
    %v1323 = vadd.f32 %v1228, %v1318
    %v1324 = vadd.f32 %v1231, %v1318
    %v1325 = vadd.f32 %v1234, %v1318
    %v1326 = vadd.f32 %v1237, %v1318
    %v1327 = vadd.f32 %v1240, %v1318
    %v1328 = vadd.f32 %v1243, %v1318
    %v1329 = vadd.f32 %v1246, %v1318
    %v1330 = vadd.f32 %v1249, %v1318
    %v1331 = vadd.f32 %v1252, %v1318
    %v1332 = vadd.f32 %v1255, %v1318
    %v1333 = vadd.f32 %v1258, %v1318
    %v1334 = vadd.f32 %v1261, %v1318
    %v1335 = vadd.f32 %v1264, %v1318
    %v1336 = vadd.f32 %v1267, %v1318
    %v1337 = vadd.f32 %v1270, %v1318
    %v1338 = vadd.f32 %v1273, %v1318
    %v1339 = vadd.f32 %v1276, %v1318
    %v1340 = vadd.f32 %v1279, %v1318
    %v1341 = vadd.f32 %v1282, %v1318
    %v1342 = vadd.f32 %v1285, %v1318
    %v1343 = vadd.f32 %v1288, %v1318
    %v1344 = vadd.f32 %v1291, %v1318
    %v1345 = vadd.f32 %v1294, %v1318
    %v1346 = vadd.f32 %v1297, %v1318
    %v1347 = vadd.f32 %v1300, %v1318
    %v1348 = vadd.f32 %v1303, %v1318
    %v1349 = vadd.f32 %v1306, %v1318
    %v1350 = vadd.f32 %v1309, %v1318
    %v1351 = vadd.f32 %v1312, %v1318
    %1353 = vset.pattern.permute.xlu0 0
    %1354 = vperm.xlu0 %1353, %v1320
    %v1355 = vpop.permute.xlu0 %1354
    %1358 = vset.pattern.permute.xlu0 0
    %1359 = vperm.xlu0 %1358, %v1321
    %v1360 = vpop.permute.xlu0 %1359
    %1363 = vset.pattern.permute.xlu0 0
    %1364 = vperm.xlu0 %1363, %v1322
    %v1365 = vpop.permute.xlu0 %1364
    %1368 = vset.pattern.permute.xlu0 0
    %1369 = vperm.xlu0 %1368, %v1323
    %v1370 = vpop.permute.xlu0 %1369
    %1373 = vset.pattern.permute.xlu0 0
    %1374 = vperm.xlu0 %1373, %v1324
    %v1375 = vpop.permute.xlu0 %1374
    %1378 = vset.pattern.permute.xlu0 0
    %1379 = vperm.xlu0 %1378, %v1325
    %v1380 = vpop.permute.xlu0 %1379
    %1383 = vset.pattern.permute.xlu0 0
    %1384 = vperm.xlu0 %1383, %v1326
    %v1385 = vpop.permute.xlu0 %1384
    %1388 = vset.pattern.permute.xlu0 0
    %1389 = vperm.xlu0 %1388, %v1327
    %v1390 = vpop.permute.xlu0 %1389
    %1393 = vset.pattern.permute.xlu0 0
    %1394 = vperm.xlu0 %1393, %v1328
    %v1395 = vpop.permute.xlu0 %1394
    %1398 = vset.pattern.permute.xlu0 0
    %1399 = vperm.xlu0 %1398, %v1329
    %v1400 = vpop.permute.xlu0 %1399
    %1403 = vset.pattern.permute.xlu0 0
    %1404 = vperm.xlu0 %1403, %v1330
    %v1405 = vpop.permute.xlu0 %1404
    %1408 = vset.pattern.permute.xlu0 0
    %1409 = vperm.xlu0 %1408, %v1331
    %v1410 = vpop.permute.xlu0 %1409
    %1413 = vset.pattern.permute.xlu0 0
    %1414 = vperm.xlu0 %1413, %v1332
    %v1415 = vpop.permute.xlu0 %1414
    %1418 = vset.pattern.permute.xlu0 0
    %1419 = vperm.xlu0 %1418, %v1333
    %v1420 = vpop.permute.xlu0 %1419
    %1423 = vset.pattern.permute.xlu0 0
    %1424 = vperm.xlu0 %1423, %v1334
    %v1425 = vpop.permute.xlu0 %1424
    %1428 = vset.pattern.permute.xlu0 0
    %1429 = vperm.xlu0 %1428, %v1335
    %v1430 = vpop.permute.xlu0 %1429
    %1433 = vset.pattern.permute.xlu0 0
    %1434 = vperm.xlu0 %1433, %v1336
    %v1435 = vpop.permute.xlu0 %1434
    %1438 = vset.pattern.permute.xlu0 0
    %1439 = vperm.xlu0 %1438, %v1337
    %v1440 = vpop.permute.xlu0 %1439
    %1443 = vset.pattern.permute.xlu0 0
    %1444 = vperm.xlu0 %1443, %v1338
    %v1445 = vpop.permute.xlu0 %1444
    %1448 = vset.pattern.permute.xlu0 0
    %1449 = vperm.xlu0 %1448, %v1339
    %v1450 = vpop.permute.xlu0 %1449
    %1453 = vset.pattern.permute.xlu0 0
    %1454 = vperm.xlu0 %1453, %v1340
    %v1455 = vpop.permute.xlu0 %1454
    %1458 = vset.pattern.permute.xlu0 0
    %1459 = vperm.xlu0 %1458, %v1341
    %v1460 = vpop.permute.xlu0 %1459
    %1463 = vset.pattern.permute.xlu0 0
    %1464 = vperm.xlu0 %1463, %v1342
    %v1465 = vpop.permute.xlu0 %1464
    %1468 = vset.pattern.permute.xlu0 0
    %1469 = vperm.xlu0 %1468, %v1343
    %v1470 = vpop.permute.xlu0 %1469
    %1473 = vset.pattern.permute.xlu0 0
    %1474 = vperm.xlu0 %1473, %v1344
    %v1475 = vpop.permute.xlu0 %1474
    %1478 = vset.pattern.permute.xlu0 0
    %1479 = vperm.xlu0 %1478, %v1345
    %v1480 = vpop.permute.xlu0 %1479
    %1483 = vset.pattern.permute.xlu0 0
    %1484 = vperm.xlu0 %1483, %v1346
    %v1485 = vpop.permute.xlu0 %1484
    %1488 = vset.pattern.permute.xlu0 0
    %1489 = vperm.xlu0 %1488, %v1347
    %v1490 = vpop.permute.xlu0 %1489
    %1493 = vset.pattern.permute.xlu0 0
    %1494 = vperm.xlu0 %1493, %v1348
    %v1495 = vpop.permute.xlu0 %1494
    %1498 = vset.pattern.permute.xlu0 0
    %1499 = vperm.xlu0 %1498, %v1349
    %v1500 = vpop.permute.xlu0 %1499
    %1503 = vset.pattern.permute.xlu0 0
    %1504 = vperm.xlu0 %1503, %v1350
    %v1505 = vpop.permute.xlu0 %1504
    %1508 = vset.pattern.permute.xlu0 0
    %1509 = vperm.xlu0 %1508, %v1351
    %v1510 = vpop.permute.xlu0 %1509
    %1512 = vst [vmem:[%s10] sm:$0xff] %v1355
    %1513 = vst [vmem:[%s10 + $0x8] sm:$0xff] %v1360
    %1514 = vst [vmem:[%s10 + $0x10] sm:$0xff] %v1365
    %1515 = vst [vmem:[%s10 + $0x18] sm:$0xff] %v1370
    %1516 = vst [vmem:[%s10 + $0x20] sm:$0xff] %v1375
    %1517 = vst [vmem:[%s10 + $0x28] sm:$0xff] %v1380
    %1518 = vst [vmem:[%s10 + $0x30] sm:$0xff] %v1385
    %1519 = vst [vmem:[%s10 + $0x38] sm:$0xff] %v1390
    %1520 = vst [vmem:[%s10 + $0x40] sm:$0xff] %v1395
    %1521 = vst [vmem:[%s10 + $0x48] sm:$0xff] %v1400
    %1522 = vst [vmem:[%s10 + $0x50] sm:$0xff] %v1405
    %1523 = vst [vmem:[%s10 + $0x58] sm:$0xff] %v1410
    %1524 = vst [vmem:[%s10 + $0x60] sm:$0xff] %v1415
    %1525 = vst [vmem:[%s10 + $0x68] sm:$0xff] %v1420
    %1526 = vst [vmem:[%s10 + $0x70] sm:$0xff] %v1425
    %1527 = vst [vmem:[%s10 + $0x78] sm:$0xff] %v1430
    %1528 = vst [vmem:[%s10 + $0x80] sm:$0xff] %v1435
    %1529 = vst [vmem:[%s10 + $0x88] sm:$0xff] %v1440
    %1530 = vst [vmem:[%s10 + $0x90] sm:$0xff] %v1445
    %1531 = vst [vmem:[%s10 + $0x98] sm:$0xff] %v1450
    %1532 = vst [vmem:[%s10 + $0xa0] sm:$0xff] %v1455
    %1533 = vst [vmem:[%s10 + $0xa8] sm:$0xff] %v1460
    %1534 = vst [vmem:[%s10 + $0xb0] sm:$0xff] %v1465
    %1535 = vst [vmem:[%s10 + $0xb8] sm:$0xff] %v1470
    %1536 = vst [vmem:[%s10 + $0xc0] sm:$0xff] %v1475
    %1537 = vst [vmem:[%s10 + $0xc8] sm:$0xff] %v1480
    %1538 = vst [vmem:[%s10 + $0xd0] sm:$0xff] %v1485
    %1539 = vst [vmem:[%s10 + $0xd8] sm:$0xff] %v1490
    %1540 = vst [vmem:[%s10 + $0xe0] sm:$0xff] %v1495
    %1541 = vst [vmem:[%s10 + $0xe8] sm:$0xff] %v1500
    %1542 = vst [vmem:[%s10 + $0xf0] sm:$0xff] %v1505
    %1543 = vst [vmem:[%s10 + $0xf8] sm:$0xff] %v1510
  $region41: #{_forward.1} parent=0 // pred_fallthru
    _
  %v1544 = vld [vmem:[#allocation2] sm:$0xff]
  %v1545 = vld [vmem:[#allocation2 + $0x8] sm:$0xff]
  %v1546 = vld [vmem:[#allocation2 + $0x10] sm:$0xff]
  %v1547 = vld [vmem:[#allocation2 + $0x18] sm:$0xff]
  %v1548 = vld [vmem:[#allocation2 + $0x20] sm:$0xff]
  %v1549 = vld [vmem:[#allocation2 + $0x28] sm:$0xff]
  %v1550 = vld [vmem:[#allocation2 + $0x30] sm:$0xff]
  %v1551 = vld [vmem:[#allocation2 + $0x38] sm:$0xff]
  %v1552 = vld [vmem:[#allocation2 + $0x40] sm:$0xff]
  %v1553 = vld [vmem:[#allocation2 + $0x48] sm:$0xff]
  %v1554 = vld [vmem:[#allocation2 + $0x50] sm:$0xff]
  %v1555 = vld [vmem:[#allocation2 + $0x58] sm:$0xff]
  %v1556 = vld [vmem:[#allocation2 + $0x60] sm:$0xff]
  %v1557 = vld [vmem:[#allocation2 + $0x68] sm:$0xff]
  %v1558 = vld [vmem:[#allocation2 + $0x70] sm:$0xff]
  %v1559 = vld [vmem:[#allocation2 + $0x78] sm:$0xff]
  %v1560 = vld [vmem:[%s3] sm:$0xf]
  %v1561 = vld [vmem:[%s3 + $0x4] sm:$0xf]
  %v1562 = vld [vmem:[%s3 + $0x8] sm:$0xf]
  %v1563 = vld [vmem:[%s3 + $0xc] sm:$0xf]
  %v1564 = vld [vmem:[%s3 + $0x10] sm:$0xf]
  %v1565 = vld [vmem:[%s3 + $0x14] sm:$0xf]
  %v1566 = vld [vmem:[%s3 + $0x18] sm:$0xf]
  %v1567 = vld [vmem:[%s3 + $0x1c] sm:$0xf]
  %v1568 = vld [vmem:[%s4] sm:$0x1]
  %v1570 = vlaneseq
  %v1571 = vshrl.u32 %v1570, 7
  %v1572 = vsub.s32 0, %v1571
  %v1573 = vrot.slane %v1568, %v1572
  %v1583 = vunpack.c.l.b16 %v1560
  %v1584 = vunpack.c.l.b16 %v1561
  %v1585 = vunpack.c.l.b16 %v1562
  %v1586 = vunpack.c.l.b16 %v1563
  %v1587 = vunpack.c.l.b16 %v1564
  %v1588 = vunpack.c.l.b16 %v1565
  %v1589 = vunpack.c.l.b16 %v1566
  %v1590 = vunpack.c.l.b16 %v1567
  %v1591 = vpack.c.b16 %v1584, %v1583
  %v1592 = vpack.c.b16 %v1586, %v1585
  %v1593 = vpack.c.b16 %v1588, %v1587
  %v1594 = vpack.c.b16 %v1590, %v1589
  %vm1599 = vcmask 523264
  %v1601 = vsel %vm1599, %v1544, 0
  %v1604 = vsel %vm1599, %v1545, 0
  %v1607 = vsel %vm1599, %v1546, 0
  %v1610 = vsel %vm1599, %v1547, 0
  %v1613 = vsel %vm1599, %v1548, 0
  %v1616 = vsel %vm1599, %v1549, 0
  %v1619 = vsel %vm1599, %v1550, 0
  %v1622 = vsel %vm1599, %v1551, 0
  %v1625 = vsel %vm1599, %v1552, 0
  %v1628 = vsel %vm1599, %v1553, 0
  %v1631 = vsel %vm1599, %v1554, 0
  %v1634 = vsel %vm1599, %v1555, 0
  %v1637 = vsel %vm1599, %v1556, 0
  %v1640 = vsel %vm1599, %v1557, 0
  %v1643 = vsel %vm1599, %v1558, 0
  %v1646 = vsel %vm1599, %v1559, 0
  %1648 = vmatprep.subr.bf16.mxu0 0
  %1649 = vmatpush1.bf16.msra.mxu0 %v1591
  %1650 = vmatprep.subr.bf16.mxu0 0
  %1651 = vmatpush1.bf16.msra.mxu0 %v1592
  %1652 = vmatprep.subr.bf16.mxu0 0
  %1653 = vmatpush1.bf16.msra.mxu0 %v1593
  %1654 = vmatprep.subr.bf16.mxu0 0
  %1655 = vmatpush1.bf16.msra.mxu0 %v1594
  %1656 = vmatprep.subr.bf16.mxu0 0
  %1657 = vmatpush1.bf16.msra.mxu0 0
  %1658 = vmatprep.subr.bf16.mxu0 0
  %1659 = vmatpush1.bf16.msra.mxu0 0
  %1660 = vmatprep.subr.bf16.mxu0 0
  %1661 = vmatpush1.bf16.msra.mxu0 0
  %1662 = vmatprep.subr.bf16.mxu0 0
  %1663 = vmatpush1.bf16.msra.mxu0 0
  %1664 = vmatprep.subr.bf16.mxu0 0
  %1665 = vmatpush1.bf16.msra.mxu0 0
  %1666 = vmatprep.subr.bf16.mxu0 0
  %1667 = vmatpush1.bf16.msra.mxu0 0
  %1668 = vmatprep.subr.bf16.mxu0 0
  %1669 = vmatpush1.bf16.msra.mxu0 0
  %1670 = vmatprep.subr.bf16.mxu0 0
  %1671 = vmatpush1.bf16.msra.mxu0 0
  %1672 = vmatprep.subr.bf16.mxu0 0
  %1673 = vmatpush1.bf16.msra.mxu0 0
  %1674 = vmatprep.subr.bf16.mxu0 0
  %1675 = vmatpush1.bf16.msra.mxu0 0
  %1676 = vmatprep.subr.bf16.mxu0 0
  %1677 = vmatpush1.bf16.msra.mxu0 0
  %1678 = vmatprep.subr.bf16.mxu0 0
  %1679 = vmatpush1.bf16.msra.mxu0 0
  %1680 = vmatprep.mubr.bf16.mxu0 0
  %1681 = vmatmul.mubr.bf16.gmra.mrb[0].mxu0 %v1601
  %v1682 = vpop.f32.mrb[0].mxu0
  %v1683 = vadd.f32 %v1573, %v1682
  %v1684 = vpop.f32.mrb[0].mxu0
  %v1685 = vpop.f32.mrb[0].mxu0
  %v1686 = vadd.f32 %v1573, %v1685
  %v1687 = vpop.f32.mrb[0].mxu0
  %1688 = vmatprep.mubr.bf16.mxu0 0
  %1689 = vmatmul.mubr.bf16.gmra.mrb[0].mxu0 %v1604
  %v1690 = vpop.f32.mrb[0].mxu0
  %v1691 = vadd.f32 %v1573, %v1690
  %v1692 = vpop.f32.mrb[0].mxu0
  %v1693 = vpop.f32.mrb[0].mxu0
  %v1694 = vadd.f32 %v1573, %v1693
  %v1695 = vpop.f32.mrb[0].mxu0
  %1696 = vmatprep.mubr.bf16.mxu0 0
  %1697 = vmatmul.mubr.bf16.gmra.mrb[0].mxu0 %v1607
  %v1698 = vpop.f32.mrb[0].mxu0
  %v1699 = vadd.f32 %v1573, %v1698
  %v1700 = vpop.f32.mrb[0].mxu0
  %v1701 = vpop.f32.mrb[0].mxu0
  %v1702 = vadd.f32 %v1573, %v1701
  %v1703 = vpop.f32.mrb[0].mxu0
  %1704 = vmatprep.mubr.bf16.mxu0 0
  %1705 = vmatmul.mubr.bf16.gmra.mrb[0].mxu0 %v1610
  %v1706 = vpop.f32.mrb[0].mxu0
  %v1707 = vadd.f32 %v1573, %v1706
  %v1708 = vpop.f32.mrb[0].mxu0
  %v1709 = vpop.f32.mrb[0].mxu0
  %v1710 = vadd.f32 %v1573, %v1709
  %v1711 = vpop.f32.mrb[0].mxu0
  %1712 = vmatprep.mubr.bf16.mxu0 0
  %1713 = vmatmul.mubr.bf16.gmra.mrb[0].mxu0 %v1613
  %v1714 = vpop.f32.mrb[0].mxu0
  %v1715 = vadd.f32 %v1573, %v1714
  %v1716 = vpop.f32.mrb[0].mxu0
  %v1717 = vpop.f32.mrb[0].mxu0
  %v1718 = vadd.f32 %v1573, %v1717
  %v1719 = vpop.f32.mrb[0].mxu0
  %1720 = vmatprep.mubr.bf16.mxu0 0
  %1721 = vmatmul.mubr.bf16.gmra.mrb[0].mxu0 %v1616
  %v1722 = vpop.f32.mrb[0].mxu0
  %v1723 = vadd.f32 %v1573, %v1722
  %v1724 = vpop.f32.mrb[0].mxu0
  %v1725 = vpop.f32.mrb[0].mxu0
  %v1726 = vadd.f32 %v1573, %v1725
  %v1727 = vpop.f32.mrb[0].mxu0
  %1728 = vmatprep.mubr.bf16.mxu0 0
  %1729 = vmatmul.mubr.bf16.gmra.mrb[0].mxu0 %v1619
  %v1730 = vpop.f32.mrb[0].mxu0
  %v1731 = vadd.f32 %v1573, %v1730
  %v1732 = vpop.f32.mrb[0].mxu0
  %v1733 = vpop.f32.mrb[0].mxu0
  %v1734 = vadd.f32 %v1573, %v1733
  %v1735 = vpop.f32.mrb[0].mxu0
  %1736 = vmatprep.mubr.bf16.mxu0 0
  %1737 = vmatmul.mubr.bf16.gmra.mrb[0].mxu0 %v1622
  %v1738 = vpop.f32.mrb[0].mxu0
  %v1739 = vadd.f32 %v1573, %v1738
  %v1740 = vpop.f32.mrb[0].mxu0
  %v1741 = vpop.f32.mrb[0].mxu0
  %v1742 = vadd.f32 %v1573, %v1741
  %v1743 = vpop.f32.mrb[0].mxu0
  %1744 = vmatprep.mubr.bf16.mxu0 0
  %1745 = vmatmul.mubr.bf16.gmra.mrb[0].mxu0 %v1625
  %v1746 = vpop.f32.mrb[0].mxu0
  %v1747 = vadd.f32 %v1573, %v1746
  %v1748 = vpop.f32.mrb[0].mxu0
  %v1749 = vpop.f32.mrb[0].mxu0
  %v1750 = vadd.f32 %v1573, %v1749
  %v1751 = vpop.f32.mrb[0].mxu0
  %1752 = vmatprep.mubr.bf16.mxu0 0
  %1753 = vmatmul.mubr.bf16.gmra.mrb[0].mxu0 %v1628
  %v1754 = vpop.f32.mrb[0].mxu0
  %v1755 = vadd.f32 %v1573, %v1754
  %v1756 = vpop.f32.mrb[0].mxu0
  %v1757 = vpop.f32.mrb[0].mxu0
  %v1758 = vadd.f32 %v1573, %v1757
  %v1759 = vpop.f32.mrb[0].mxu0
  %1760 = vmatprep.mubr.bf16.mxu0 0
  %1761 = vmatmul.mubr.bf16.gmra.mrb[0].mxu0 %v1631
  %v1762 = vpop.f32.mrb[0].mxu0
  %v1763 = vadd.f32 %v1573, %v1762
  %v1764 = vpop.f32.mrb[0].mxu0
  %v1765 = vpop.f32.mrb[0].mxu0
  %v1766 = vadd.f32 %v1573, %v1765
  %v1767 = vpop.f32.mrb[0].mxu0
  %1768 = vmatprep.mubr.bf16.mxu0 0
  %1769 = vmatmul.mubr.bf16.gmra.mrb[0].mxu0 %v1634
  %v1770 = vpop.f32.mrb[0].mxu0
  %v1771 = vadd.f32 %v1573, %v1770
  %v1772 = vpop.f32.mrb[0].mxu0
  %v1773 = vpop.f32.mrb[0].mxu0
  %v1774 = vadd.f32 %v1573, %v1773
  %v1775 = vpop.f32.mrb[0].mxu0
  %1776 = vmatprep.mubr.bf16.mxu0 0
  %1777 = vmatmul.mubr.bf16.gmra.mrb[0].mxu0 %v1637
  %v1778 = vpop.f32.mrb[0].mxu0
  %v1779 = vadd.f32 %v1573, %v1778
  %v1780 = vpop.f32.mrb[0].mxu0
  %v1781 = vpop.f32.mrb[0].mxu0
  %v1782 = vadd.f32 %v1573, %v1781
  %v1783 = vpop.f32.mrb[0].mxu0
  %1784 = vmatprep.mubr.bf16.mxu0 0
  %1785 = vmatmul.mubr.bf16.gmra.mrb[0].mxu0 %v1640
  %v1786 = vpop.f32.mrb[0].mxu0
  %v1787 = vadd.f32 %v1573, %v1786
  %v1788 = vpop.f32.mrb[0].mxu0
  %v1789 = vpop.f32.mrb[0].mxu0
  %v1790 = vadd.f32 %v1573, %v1789
  %v1791 = vpop.f32.mrb[0].mxu0
  %1792 = vmatprep.mubr.bf16.mxu0 0
  %1793 = vmatmul.mubr.bf16.gmra.mrb[0].mxu0 %v1643
  %v1794 = vpop.f32.mrb[0].mxu0
  %v1795 = vadd.f32 %v1573, %v1794
  %v1796 = vpop.f32.mrb[0].mxu0
  %v1797 = vpop.f32.mrb[0].mxu0
  %v1798 = vadd.f32 %v1573, %v1797
  %v1799 = vpop.f32.mrb[0].mxu0
  %1800 = vmatprep.mubr.bf16.mxu0 0
  %1801 = vmatmul.mubr.bf16.gmra.mrb[0].mxu0 %v1646
  %v1802 = vpop.f32.mrb[0].mxu0
  %v1803 = vadd.f32 %v1573, %v1802
  %v1804 = vpop.f32.mrb[0].mxu0
  %v1805 = vpop.f32.mrb[0].mxu0
  %v1806 = vadd.f32 %v1573, %v1805
  %v1807 = vpop.f32.mrb[0].mxu0
  %1808 = vdwg.mxu0
  %v1809 = vpack.c.bf16 %v1686, %v1683
  %v1810 = vpack.c.bf16 %v1694, %v1691
  %v1811 = vpack.c.bf16 %v1702, %v1699
  %v1812 = vpack.c.bf16 %v1710, %v1707
  %v1813 = vpack.c.bf16 %v1718, %v1715
  %v1814 = vpack.c.bf16 %v1726, %v1723
  %v1815 = vpack.c.bf16 %v1734, %v1731
  %v1816 = vpack.c.bf16 %v1742, %v1739
  %v1817 = vpack.c.bf16 %v1750, %v1747
  %v1818 = vpack.c.bf16 %v1758, %v1755
  %v1819 = vpack.c.bf16 %v1766, %v1763
  %v1820 = vpack.c.bf16 %v1774, %v1771
  %v1821 = vpack.c.bf16 %v1782, %v1779
  %v1822 = vpack.c.bf16 %v1790, %v1787
  %v1823 = vpack.c.bf16 %v1798, %v1795
  %v1824 = vpack.c.bf16 %v1806, %v1803
  %v1841 = vunpack.c.l.b16 %v1809
  %v1842 = vunpack.c.h.b16 %v1809
  %v1843 = vunpack.c.l.b16 %v1810
  %v1844 = vunpack.c.h.b16 %v1810
  %v1845 = vunpack.c.l.b16 %v1811
  %v1846 = vunpack.c.h.b16 %v1811
  %v1847 = vunpack.c.l.b16 %v1812
  %v1848 = vunpack.c.h.b16 %v1812
  %v1849 = vunpack.c.l.b16 %v1813
  %v1850 = vunpack.c.h.b16 %v1813
  %v1851 = vunpack.c.l.b16 %v1814
  %v1852 = vunpack.c.h.b16 %v1814
  %v1853 = vunpack.c.l.b16 %v1815
  %v1854 = vunpack.c.h.b16 %v1815
  %v1855 = vunpack.c.l.b16 %v1816
  %v1856 = vunpack.c.h.b16 %v1816
  %v1857 = vunpack.c.l.b16 %v1817
  %v1858 = vunpack.c.h.b16 %v1817
  %v1859 = vunpack.c.l.b16 %v1818
  %v1860 = vunpack.c.h.b16 %v1818
  %v1861 = vunpack.c.l.b16 %v1819
  %v1862 = vunpack.c.h.b16 %v1819
  %v1863 = vunpack.c.l.b16 %v1820
  %v1864 = vunpack.c.h.b16 %v1820
  %v1865 = vunpack.c.l.b16 %v1821
  %v1866 = vunpack.c.h.b16 %v1821
  %v1867 = vunpack.c.l.b16 %v1822
  %v1868 = vunpack.c.h.b16 %v1822
  %v1869 = vunpack.c.l.b16 %v1823
  %v1870 = vunpack.c.h.b16 %v1823
  %v1871 = vunpack.c.l.b16 %v1824
  %v1872 = vunpack.c.h.b16 %v1824
  %v1873 = vpack.c.b16 %v1841, %v1841
  %v1874 = vpack.c.b16 %v1842, %v1842
  %v1875 = vpack.c.b16 %v1843, %v1843
  %v1876 = vpack.c.b16 %v1844, %v1844
  %v1877 = vpack.c.b16 %v1845, %v1845
  %v1878 = vpack.c.b16 %v1846, %v1846
  %v1879 = vpack.c.b16 %v1847, %v1847
  %v1880 = vpack.c.b16 %v1848, %v1848
  %v1881 = vpack.c.b16 %v1849, %v1849
  %v1882 = vpack.c.b16 %v1850, %v1850
  %v1883 = vpack.c.b16 %v1851, %v1851
  %v1884 = vpack.c.b16 %v1852, %v1852
  %v1885 = vpack.c.b16 %v1853, %v1853
  %v1886 = vpack.c.b16 %v1854, %v1854
  %v1887 = vpack.c.b16 %v1855, %v1855
  %v1888 = vpack.c.b16 %v1856, %v1856
  %v1889 = vpack.c.b16 %v1857, %v1857
  %v1890 = vpack.c.b16 %v1858, %v1858
  %v1891 = vpack.c.b16 %v1859, %v1859
  %v1892 = vpack.c.b16 %v1860, %v1860
  %v1893 = vpack.c.b16 %v1861, %v1861
  %v1894 = vpack.c.b16 %v1862, %v1862
  %v1895 = vpack.c.b16 %v1863, %v1863
  %v1896 = vpack.c.b16 %v1864, %v1864
  %v1897 = vpack.c.b16 %v1865, %v1865
  %v1898 = vpack.c.b16 %v1866, %v1866
  %v1899 = vpack.c.b16 %v1867, %v1867
  %v1900 = vpack.c.b16 %v1868, %v1868
  %v1901 = vpack.c.b16 %v1869, %v1869
  %v1902 = vpack.c.b16 %v1870, %v1870
  %v1903 = vpack.c.b16 %v1871, %v1871
  %v1904 = vpack.c.b16 %v1872, %v1872
  %1937 = vst [vmem:[%s9] sm:$0xf] %v1873
  %1938 = vst [vmem:[%s9 + $0x4] sm:$0xf] %v1874
  %1939 = vst [vmem:[%s9 + $0x8] sm:$0xf] %v1875
  %1940 = vst [vmem:[%s9 + $0xc] sm:$0xf] %v1876
  %1941 = vst [vmem:[%s9 + $0x10] sm:$0xf] %v1877
  %1942 = vst [vmem:[%s9 + $0x14] sm:$0xf] %v1878
  %1943 = vst [vmem:[%s9 + $0x18] sm:$0xf] %v1879
  %1944 = vst [vmem:[%s9 + $0x1c] sm:$0xf] %v1880
  %1945 = vst [vmem:[%s9 + $0x20] sm:$0xf] %v1881
  %1946 = vst [vmem:[%s9 + $0x24] sm:$0xf] %v1882
  %1947 = vst [vmem:[%s9 + $0x28] sm:$0xf] %v1883
  %1948 = vst [vmem:[%s9 + $0x2c] sm:$0xf] %v1884
  %1949 = vst [vmem:[%s9 + $0x30] sm:$0xf] %v1885
  %1950 = vst [vmem:[%s9 + $0x34] sm:$0xf] %v1886
  %1951 = vst [vmem:[%s9 + $0x38] sm:$0xf] %v1887
  %1952 = vst [vmem:[%s9 + $0x3c] sm:$0xf] %v1888
  %1953 = vst [vmem:[%s9 + $0x40] sm:$0xf] %v1889
  %1954 = vst [vmem:[%s9 + $0x44] sm:$0xf] %v1890
  %1955 = vst [vmem:[%s9 + $0x48] sm:$0xf] %v1891
  %1956 = vst [vmem:[%s9 + $0x4c] sm:$0xf] %v1892
  %1957 = vst [vmem:[%s9 + $0x50] sm:$0xf] %v1893
  %1958 = vst [vmem:[%s9 + $0x54] sm:$0xf] %v1894
  %1959 = vst [vmem:[%s9 + $0x58] sm:$0xf] %v1895
  %1960 = vst [vmem:[%s9 + $0x5c] sm:$0xf] %v1896
  %1961 = vst [vmem:[%s9 + $0x60] sm:$0xf] %v1897
  %1962 = vst [vmem:[%s9 + $0x64] sm:$0xf] %v1898
  %1963 = vst [vmem:[%s9 + $0x68] sm:$0xf] %v1899
  %1964 = vst [vmem:[%s9 + $0x6c] sm:$0xf] %v1900
  %1965 = vst [vmem:[%s9 + $0x70] sm:$0xf] %v1901
  %1966 = vst [vmem:[%s9 + $0x74] sm:$0xf] %v1902
  %1967 = vst [vmem:[%s9 + $0x78] sm:$0xf] %v1903
  %1968 = vst [vmem:[%s9 + $0x7c] sm:$0xf] %v1904
  // Predicated region
  $region42: #{_forward.1} parent=0 // pred_check
    _
  $region43: #{_forward.1} parent=0 // pred_check_branch
    %1970 = sbr.rel (0) target = $region45
  $region44: #{_forward.1} parent=0 // pred_region
    _
  $region45: #{_forward.1} parent=0 // pred_fallthru
    _
  // Predicated region
  $region46: #{_forward.1} parent=0 // pred_check
    _
  $region47: #{_forward.1} parent=0 // pred_check_branch
    %1972 = sbr.rel (0) target = $region49
  $region48: #{_forward.1} parent=0 // pred_region
    _
  $region49: #{_forward.1} parent=0 // pred_fallthru
    _
  // Predicated region
  $region50: #{_forward.1} parent=0 // pred_check
    _
  $region51: #{_forward.1} parent=0 // pred_check_branch
    %1974 = sbr.rel (0) target = $region53
  $region52: #{_forward.1} parent=0 // pred_region
    _
  $region53: #{_forward.1} parent=0 // pred_fallthru
    _
  // Predicated region
  $region54: #{_forward.1} parent=0 // pred_check
    _
  $region55: #{_forward.1} parent=0 // pred_check_branch
    %1976 = sbr.rel (0) target = $region57
  $region56: #{_forward.1} parent=0 // pred_region
    _
  $region57: #{_forward.1} parent=0 // pred_fallthru
    _

</llo_original>
